<compile_context>
chip_gen: v7x
topology: tpu7x:2x2x1
jax: 0.10.0
libtpu: 0.0.40
codegen_flags: <defaults>
</compile_context>

<pallas_src>
import functools

import jax
import jax.numpy as jnp
from jax.experimental import pallas as pl
from jax.experimental.pallas import tpu as pltpu


def _itemsize(dt):
    return jnp.dtype(dt).itemsize


# ----------------------------------------------------------------------------
# Kernel 1: fused TxaFilterEnsemble + NlinCore (block = `rows` batch rows)
# ----------------------------------------------------------------------------
def _txa_nlin_kernel(x_ref, wt_ref, bt_ref, wn_ref, bn_ref, o_ref, tok_ref,
                     *, n_channels, rows, t_out, num_layers, compute_dtype):
    C, Tout, cd = n_channels, t_out, compute_dtype

    # --- Stage 1: per-channel time filter (Tin -> Tout).  The re/im pair (k)
    # is folded into the matmul M dimension (no weight repeat over k).  The
    # results are written into the (2C, rows*Tout) token matrix `tok_ref`
    # (features in sublanes, (row, time) tokens in lanes -> lane-dense).
    xrows = [x_ref[r] for r in range(rows)]                       # (2C, Tin) each
    for c in range(C):
        if rows > 1:
            lhs = jnp.concatenate(
                [xr[2 * c:2 * c + 2, :] for xr in xrows], axis=0)  # (2*rows, Tin)
        else:
            lhs = xrows[0][2 * c:2 * c + 2, :]
        res = jnp.dot(lhs, wt_ref[c], preferred_element_type=jnp.float32)
        bias = bt_ref[2 * c:2 * c + 2, :]                          # (2, Tout) f32
        for r in range(rows):
            tok_ref[2 * c:2 * c + 2, r * Tout:(r + 1) * Tout] = (
                res[2 * r:2 * r + 2, :] + bias)

    # --- Stage 2 (hot path): num_layers x (Linear(2C,2C) + SiLU).
    h = tok_ref[...]                                               # (2C, N) f32
    for l in range(num_layers):
        h = jnp.dot(wn_ref[l], h.astype(cd),
                    preferred_element_type=jnp.float32) + bn_ref[l]
        # SiLU via a single EUP transcendental (exact sigmoid, no approx recip).
        h = h * (0.5 + 0.5 * jnp.tanh(0.5 * h))

    # --- Scatter tokens into the (C, rows, 2, Tout) output block; this is
    # exactly the layout the rxa+BN kernel consumes (no HBM transpose between
    # the two pallas_calls).
    for r in range(rows):
        slab = h[:, r * Tout:(r + 1) * Tout].astype(o_ref.dtype)   # (2C, Tout)
        for c in range(C):
            o_ref[c, r] = slab[2 * c:2 * c + 2, :]


# ----------------------------------------------------------------------------
# Kernel 2: fused RxaFilterEnsemble + BatchNorm1d (block = `cb` channels)
# ----------------------------------------------------------------------------
def _rxa_bn_kernel(h_ref, w_ref, b_ref, g_ref, beta_ref, o_ref, *, cb, eps):
    # h_ref: (cb, B, 2*Tout)   h[c, b, k*Tout + t] = nlin_out[b, t, c, k]
    # w_ref: (cb, 2*Tout, Tout) stacked [k=0 ; k=1] rxa weights per channel
    # b_ref: (cb, 1, Tout); g_ref / beta_ref: (cb, 1, 1); o_ref: (cb, B, Tout)
    for j in range(cb):
        # Single merged K = 2*Tout contraction per channel (review item 4).
        f = jnp.dot(h_ref[j], w_ref[j],
                    preferred_element_type=jnp.float32) + b_ref[j]   # (B, Tout)
        n = f.shape[0] * f.shape[1]
        s = jnp.sum(jnp.sum(f, axis=1, keepdims=True), axis=0, keepdims=True)
        mean = s * (1.0 / n)
        d = f - mean
        ss = jnp.sum(jnp.sum(d * d, axis=1, keepdims=True), axis=0, keepdims=True)
        inv = jax.lax.rsqrt(ss * (1.0 / n) + eps)
        o_ref[j] = g_ref[j] * (d * inv) + beta_ref[j]


# ----------------------------------------------------------------------------
# Tile pickers / VMEM sizing helpers
# ----------------------------------------------------------------------------
def _pick_rows_per_block(B, Tout, twoC, *, max_rows=8):
    """Batch rows per fused-kernel grid step.

    Keeps >=2 grid steps when B >= 2 (megacore / pipelining), keeps the token
    tile around <=256 KiB of f32 (intermediates stay vreg-friendly), and keeps
    the in-kernel unrolled loops short."""
    target_lanes = max(Tout, min(1024, (256 * 1024) // (4 * twoC)))
    cap = max(1, min(max_rows, target_lanes // max(Tout, 1)))
    if B >= 2:
        cap = max(1, min(cap, B // 2))
    rows = 1
    for d in range(1, cap + 1):
        if B % d == 0:
            rows = d
    return rows


def _pick_channel_block(C, B, Tout, h_esz, w_esz, *, budget=24 << 20):
    """Largest divisor of C whose double-buffered block footprint fits the
    budget while keeping >=2 grid steps when C >= 2 (VMEM-aware for v7x)."""
    best = 1
    for cb in range(1, C + 1):
        if C % cb:
            continue
        fp = 2 * cb * (B * 2 * Tout * h_esz + 2 * Tout * Tout * w_esz
                       + Tout * 4 + 2 * 4 + B * Tout * 4)
        if fp > budget:
            continue
        if C >= 2 and (C // cb) < 2:
            continue
        best = cb
    return best


def _compiler_params(footprint_bytes):
    """Derive vmem_limit_bytes from the actual block footprint; never request
    an entire physical VMEM (v7x has only 64 MiB per TensorCore)."""
    kw = dict(dimension_semantics=("parallel",))
    need = int(footprint_bytes * 1.5) + (2 << 20)
    if need > (16 << 20):
        kw["vmem_limit_bytes"] = min(need, 56 << 20)
    return pltpu.CompilerParams(**kw)


# ----------------------------------------------------------------------------
# Parameter preparation (hoisted out of the jitted forward; run once)
# ----------------------------------------------------------------------------
def prepare_params(params, compute_dtype=jnp.bfloat16):
    cd = compute_dtype
    C, Tout, _Tin = params["w_txa"].shape
    L, twoC, _ = params["w_nlin"].shape
    return dict(
        wt=params["w_txa"].transpose(0, 2, 1).astype(cd),            # (C, Tin, Tout)
        bt=jnp.repeat(params["b_txa"], 2, axis=0).astype(jnp.float32),  # (2C, Tout)
        wn=params["w_nlin"].astype(cd),                               # (L, 2C, 2C)
        bn=params["b_nlin"].reshape(L, twoC, 1).astype(jnp.float32),
        # rxa weights stacked [k=0 ; k=1] along the contraction axis:
        # wr[c, k*Tout + t, o] = W_rxa[c, o, t, k]
        wr=params["w_rxa"].transpose(0, 3, 2, 1).reshape(C, 2 * Tout, Tout).astype(cd),
        br=params["b_rxa"].reshape(C, 1, Tout).astype(jnp.float32),
        gamma=params["gamma"].reshape(C, 1, 1).astype(jnp.float32),
        beta=params["beta"].reshape(C, 1, 1).astype(jnp.float32),
    )


# ----------------------------------------------------------------------------
# Forward pass
# ----------------------------------------------------------------------------
def multi_channel_mlp_prepared(x, prep, *, eps=1e-5):
    B, Tin, C, two = x.shape
    assert two == 2
    cd = prep["wt"].dtype
    Tout = prep["wt"].shape[2]
    L = prep["wn"].shape[0]
    twoC = 2 * C
    wsz = _itemsize(cd)

    # Only activation-layout transform in the pipeline: x -> (B, 2C, Tin),
    # feature index = c*2 + k (PyTorch flatten order).  Small tensor.
    x2 = jnp.transpose(x, (0, 2, 3, 1)).reshape(B, twoC, Tin).astype(cd)

    # ---------------- Stage 1+2 fused: txa filter + NlinCore ----------------
    rows = _pick_rows_per_block(B, Tout, twoC)
    fp1 = (2 * rows * twoC * Tin * wsz
           + 2 * C * Tin * Tout * wsz
           + 2 * twoC * Tout * 4
           + 2 * L * twoC * twoC * wsz
           + 2 * L * twoC * 4
           + 2 * C * rows * 2 * Tout * wsz
           + twoC * rows * Tout * 4)
    cost1 = pl.CostEstimate(
        flops=int(2 * B * twoC * Tin * Tout + 2 * L * B * Tout * twoC * twoC),
        transcendentals=int(L * B * Tout * twoC),
        bytes_accessed=int(wsz * (B * twoC * Tin + C * Tin * Tout
                                  + L * twoC * twoC + B * twoC * Tout)
                           + 4 * (twoC * Tout + L * twoC)),
    )
    h1 = pl.pallas_call(
        functools.partial(_txa_nlin_kernel, n_channels=C, rows=rows,
                          t_out=Tout, num_layers=L, compute_dtype=cd),
        out_shape=jax.ShapeDtypeStruct((C, B, 2, Tout), cd),
        grid=(B // rows,),
        in_specs=[
            pl.BlockSpec((rows, twoC, Tin), lambda i: (i, 0, 0)),
            pl.BlockSpec((C, Tin, Tout), lambda i: (0, 0, 0)),    # weights resident
            pl.BlockSpec((twoC, Tout), lambda i: (0, 0)),
            pl.BlockSpec((L, twoC, twoC), lambda i: (0, 0, 0)),   # weights resident
            pl.BlockSpec((L, twoC, 1), lambda i: (0, 0, 0)),
        ],
        out_specs=pl.BlockSpec((C, rows, 2, Tout), lambda i: (0, i, 0, 0)),
        scratch_shapes=[pltpu.VMEM((twoC, rows * Tout), jnp.float32)],
        compiler_params=_compiler_params(fp1),
        cost_estimate=cost1,
    )(x2, prep["wt"], prep["bt"], prep["wn"], prep["bn"])

    # ---------------- Stage 3+4 fused: rxa filter + BatchNorm1d -------------
    g = h1.reshape(C, B, 2 * Tout)          # contiguity-preserving HBM reshape
    cb = _pick_channel_block(C, B, Tout, wsz, wsz)
    fp2 = 2 * cb * (B * 2 * Tout * wsz + 2 * Tout * Tout * wsz
                    + Tout * 4 + 2 * 4 + B * Tout * 4)
    cost2 = pl.CostEstimate(
        flops=int(2 * C * B * 2 * Tout * Tout + 6 * C * B * Tout),
        transcendentals=int(C),
        bytes_accessed=int(wsz * (C * B * 2 * Tout + C * 2 * Tout * Tout)
                           + 4 * (C * Tout + 2 * C + C * B * Tout)),
    )
    fout = pl.pallas_call(
        functools.partial(_rxa_bn_kernel, cb=cb, eps=eps),
        out_shape=jax.ShapeDtypeStruct((C, B, Tout), jnp.float32),
        grid=(C // cb,),
        in_specs=[
            pl.BlockSpec((cb, B, 2 * Tout), lambda i: (i, 0, 0)),
            pl.BlockSpec((cb, 2 * Tout, Tout), lambda i: (i, 0, 0)),
            pl.BlockSpec((cb, 1, Tout), lambda i: (i, 0, 0)),
            pl.BlockSpec((cb, 1, 1), lambda i: (i, 0, 0)),
            pl.BlockSpec((cb, 1, 1), lambda i: (i, 0, 0)),
        ],
        out_specs=pl.BlockSpec((cb, B, Tout), lambda i: (i, 0, 0)),
        compiler_params=_compiler_params(fp2),
        cost_estimate=cost2,
    )(g, prep["wr"], prep["br"], prep["gamma"], prep["beta"])

    # Final small transpose to the module's (batch, channels, time) output.
    return jnp.transpose(fout, (1, 0, 2))


def multi_channel_mlp(x, params, *, eps=1e-5, compute_dtype=jnp.bfloat16):
    """Convenience wrapper; for production, hoist prepare_params() out of jit."""
    return multi_channel_mlp_prepared(x, prepare_params(params, compute_dtype),
                                      eps=eps)


# ----------------------------------------------------------------------------
# Deterministic parameter setup
# ----------------------------------------------------------------------------
def init_params(key, in_seq, out_seq, n_channels, num_layers=5):
    C = n_channels
    ks = jax.random.split(key, 8)
    w_txa = (1.0 / jnp.sqrt(in_seq)) * jax.random.normal(
        ks[0], (C, out_seq, in_seq), jnp.float32)
    b_txa = 0.01 * jax.random.normal(ks[1], (C, out_seq), jnp.float32)
    # NlinCore Linear(2C,2C): the PyTorch module initializes exact identity /
    # zero bias; a small perturbation is added so the self-check actually
    # exercises the matmul wiring (forward semantics unchanged).
    eye = jnp.eye(2 * C, dtype=jnp.float32)
    w_nlin = eye[None] + 0.05 * jax.random.normal(
        ks[2], (num_layers, 2 * C, 2 * C), jnp.float32)
    b_nlin = 0.01 * jax.random.normal(ks[3], (num_layers, 2 * C), jnp.float32)
    w_rxa = (1.0 / jnp.sqrt(2.0 * out_seq)) * jax.random.normal(
        ks[4], (C, out_seq, out_seq, 2), jnp.float32)
    b_rxa = 0.01 * jax.random.normal(ks[5], (C, out_seq), jnp.float32)
    gamma = 1.0 + 0.1 * jax.random.normal(ks[6], (C,), jnp.float32)
    beta = 0.1 * jax.random.normal(ks[7], (C,), jnp.float32)
    return dict(w_txa=w_txa, b_txa=b_txa, w_nlin=w_nlin, b_nlin=b_nlin,
                w_rxa=w_rxa, b_rxa=b_rxa, gamma=gamma, beta=beta)


# ----------------------------------------------------------------------------
# Pure-JAX reference (mirrors the kernel's optional bf16 matmul casts so the
# self-check compares like against like; compute_dtype=f32 == exact module).
# ----------------------------------------------------------------------------
def reference_forward(x, p, eps=1e-5, compute_dtype=jnp.float32):
    cd = compute_dtype
    B, Tin, C, _ = x.shape
    Tout = p["w_txa"].shape[1]
    y = jnp.einsum("cot,btck->bock", p["w_txa"].astype(cd), x.astype(cd),
                   preferred_element_type=jnp.float32) \
        + p["b_txa"].T[None, :, :, None]
    h = y.reshape(B * Tout, 2 * C)
    for l in range(p["w_nlin"].shape[0]):
        h = jnp.dot(h.astype(cd), p["w_nlin"][l].T.astype(cd),
                    preferred_element_type=jnp.float32) + p["b_nlin"][l]
        h = jax.nn.silu(h)
    z = h.astype(cd).reshape(B, Tout, C, 2)
    f = jnp.einsum("cotk,btck->bco", p["w_rxa"].astype(cd), z,
                   preferred_element_type=jnp.float32) + p["b_rxa"][None]
    mean = jnp.mean(f, axis=(0, 2), keepdims=True)
    var = jnp.mean((f - mean) ** 2, axis=(0, 2), keepdims=True)
    out = (f - mean) * jax.lax.rsqrt(var + eps)
    return p["gamma"][None, :, None] * out + p["beta"][None, :, None]


# ----------------------------------------------------------------------------
if __name__ == "__main__":
    B, Tin, Tout, C = 2, 16, 8, 4
    key = jax.random.PRNGKey(0)
    kx, kp = jax.random.split(key)
    x = jax.random.normal(kx, (B, Tin, C, 2), jnp.float32)
    params = init_params(kp, Tin, Tout, C)

    fwd = jax.jit(multi_channel_mlp_prepared)

    # f32 path: exact parity with the module semantics.
    prep32 = prepare_params(params, jnp.float32)        # hoisted weight prep
    out32 = jax.block_until_ready(fwd(x, prep32))
    assert out32.shape == (B, C, Tout), out32.shape
    ref32 = reference_forward(x, params, compute_dtype=jnp.float32)
    err32 = float(jnp.max(jnp.abs(out32 - ref32)))
    assert err32 < 1e-3, f"f32 mismatch vs reference: {err32}"

    # bf16 matmul path (MXU-native, halves HBM/VMEM bytes); checked against a
    # reference that applies the same bf16 operand casts.
    prep16 = prepare_params(params, jnp.bfloat16)
    out16 = jax.block_until_ready(fwd(x, prep16))
    assert out16.shape == (B, C, Tout), out16.shape
    ref16 = reference_forward(x, params, compute_dtype=jnp.bfloat16)
    err16 = float(jnp.max(jnp.abs(out16 - ref16)))
    assert err16 < 5e-3, f"bf16 mismatch vs bf16 reference: {err16}"

    print("KERNEL_OK")
</pallas_src>

<mosaic_0001>
module attributes {stable_mosaic.version = 11 : i64} {
  func.func @_txa_nlin_kernel(%arg0: i32, %arg1: memref<1x8x16xf32, #tpu.memory_space<vmem>>, %arg2: memref<4x16x8xf32, #tpu.memory_space<vmem>>, %arg3: memref<8x8xf32, #tpu.memory_space<vmem>>, %arg4: memref<5x8x8xf32, #tpu.memory_space<vmem>>, %arg5: memref<5x8x1xf32, #tpu.memory_space<vmem>>, %arg6: memref<4x1x2x8xf32, #tpu.memory_space<vmem>>, %arg7: memref<8x8xf32, #tpu.memory_space<vmem>>) attributes {dimension_semantics = [#tpu.dimension_semantics<parallel>], iteration_bounds = array<i64: 2>, scalar_prefetch = 0 : i64, scratch_operands = 1 : i64, tpu.core_type = #tpu.core_type<tc>, window_params = [{transform_indices = @transform_0, window_bounds = array<i64: 1, 8, 16>}, {pipeline_mode = #tpu.pipeline_mode<synchronous>, transform_indices = @transform_1, window_bounds = array<i64: 4, 16, 8>}, {pipeline_mode = #tpu.pipeline_mode<synchronous>, transform_indices = @transform_2, window_bounds = array<i64: 8, 8>}, {pipeline_mode = #tpu.pipeline_mode<synchronous>, transform_indices = @transform_3, window_bounds = array<i64: 5, 8, 8>}, {pipeline_mode = #tpu.pipeline_mode<synchronous>, transform_indices = @transform_4, window_bounds = array<i64: 5, 8, 1>}, {transform_indices = @transform_5, window_bounds = array<i64: 4, 1, 2, 8>}]} {
    %c0 = arith.constant 0 : index
    %c0_0 = arith.constant 0 : index
    %c0_1 = arith.constant 0 : index
    %0 = vector.load %arg1[%c0, %c0_0, %c0_1] : memref<1x8x16xf32, #tpu.memory_space<vmem>>, vector<1x8x16xf32>
    %1 = vector.shape_cast %0 : vector<1x8x16xf32> to vector<8x16xf32>
    %2 = vector.extract_strided_slice %1 {offsets = [0, 0], sizes = [2, 16], strides = [1, 1]} : vector<8x16xf32> to vector<2x16xf32>
    %c0_2 = arith.constant 0 : index
    %c0_3 = arith.constant 0 : index
    %c0_4 = arith.constant 0 : index
    %3 = vector.load %arg2[%c0_2, %c0_3, %c0_4] : memref<4x16x8xf32, #tpu.memory_space<vmem>>, vector<1x16x8xf32>
    %4 = vector.shape_cast %3 : vector<1x16x8xf32> to vector<16x8xf32>
    %cst = arith.constant dense<0.000000e+00> : vector<2x8xf32>
    %5 = tpu.matmul %2, %4, %cst {dimension_numbers = #tpu.dot_dimension_numbers<[1], [0], [0], [1], [0, 0, 1, 1], [], []>} : vector<2x16xf32>, vector<16x8xf32>, vector<2x8xf32> -> vector<2x8xf32>
    %c0_5 = arith.constant 0 : index
    %c0_6 = arith.constant 0 : index
    %6 = vector.load %arg3[%c0_5, %c0_6] : memref<8x8xf32, #tpu.memory_space<vmem>>, vector<2x8xf32>
    %7 = arith.addf %5, %6 : vector<2x8xf32>
    %c0_7 = arith.constant 0 : index
    %c0_8 = arith.constant 0 : index
    %8 = vector.load %arg7[%c0_7, %c0_8] : memref<8x8xf32, #tpu.memory_space<vmem>>, vector<2x8xf32>
    tpu.vector_store %arg7[%c0_7, %c0_8], %7 {strides = array<i32>} : memref<8x8xf32, #tpu.memory_space<vmem>>, vector<2x8xf32>,
    %9 = vector.extract_strided_slice %1 {offsets = [2, 0], sizes = [2, 16], strides = [1, 1]} : vector<8x16xf32> to vector<2x16xf32>
    %c1 = arith.constant 1 : index
    %c0_9 = arith.constant 0 : index
    %c0_10 = arith.constant 0 : index
    %10 = vector.load %arg2[%c1, %c0_9, %c0_10] : memref<4x16x8xf32, #tpu.memory_space<vmem>>, vector<1x16x8xf32>
    %11 = vector.shape_cast %10 : vector<1x16x8xf32> to vector<16x8xf32>
    %cst_11 = arith.constant dense<0.000000e+00> : vector<2x8xf32>
    %12 = tpu.matmul %9, %11, %cst_11 {dimension_numbers = #tpu.dot_dimension_numbers<[1], [0], [0], [1], [0, 0, 1, 1], [], []>} : vector<2x16xf32>, vector<16x8xf32>, vector<2x8xf32> -> vector<2x8xf32>
    %c2 = arith.constant 2 : index
    %c0_12 = arith.constant 0 : index
    %13 = vector.load %arg3[%c2, %c0_12] : memref<8x8xf32, #tpu.memory_space<vmem>>, vector<2x8xf32>
    %14 = arith.addf %12, %13 : vector<2x8xf32>
    %c2_13 = arith.constant 2 : index
    %c0_14 = arith.constant 0 : index
    %15 = vector.load %arg7[%c2_13, %c0_14] : memref<8x8xf32, #tpu.memory_space<vmem>>, vector<2x8xf32>
    tpu.vector_store %arg7[%c2_13, %c0_14], %14 {strides = array<i32>} : memref<8x8xf32, #tpu.memory_space<vmem>>, vector<2x8xf32>,
    %16 = vector.extract_strided_slice %1 {offsets = [4, 0], sizes = [2, 16], strides = [1, 1]} : vector<8x16xf32> to vector<2x16xf32>
    %c2_15 = arith.constant 2 : index
    %c0_16 = arith.constant 0 : index
    %c0_17 = arith.constant 0 : index
    %17 = vector.load %arg2[%c2_15, %c0_16, %c0_17] : memref<4x16x8xf32, #tpu.memory_space<vmem>>, vector<1x16x8xf32>
    %18 = vector.shape_cast %17 : vector<1x16x8xf32> to vector<16x8xf32>
    %cst_18 = arith.constant dense<0.000000e+00> : vector<2x8xf32>
    %19 = tpu.matmul %16, %18, %cst_18 {dimension_numbers = #tpu.dot_dimension_numbers<[1], [0], [0], [1], [0, 0, 1, 1], [], []>} : vector<2x16xf32>, vector<16x8xf32>, vector<2x8xf32> -> vector<2x8xf32>
    %c4 = arith.constant 4 : index
    %c0_19 = arith.constant 0 : index
    %20 = vector.load %arg3[%c4, %c0_19] : memref<8x8xf32, #tpu.memory_space<vmem>>, vector<2x8xf32>
    %21 = arith.addf %19, %20 : vector<2x8xf32>
    %c4_20 = arith.constant 4 : index
    %c0_21 = arith.constant 0 : index
    %22 = vector.load %arg7[%c4_20, %c0_21] : memref<8x8xf32, #tpu.memory_space<vmem>>, vector<2x8xf32>
    tpu.vector_store %arg7[%c4_20, %c0_21], %21 {strides = array<i32>} : memref<8x8xf32, #tpu.memory_space<vmem>>, vector<2x8xf32>,
    %23 = vector.extract_strided_slice %1 {offsets = [6, 0], sizes = [2, 16], strides = [1, 1]} : vector<8x16xf32> to vector<2x16xf32>
    %c3 = arith.constant 3 : index
    %c0_22 = arith.constant 0 : index
    %c0_23 = arith.constant 0 : index
    %24 = vector.load %arg2[%c3, %c0_22, %c0_23] : memref<4x16x8xf32, #tpu.memory_space<vmem>>, vector<1x16x8xf32>
    %25 = vector.shape_cast %24 : vector<1x16x8xf32> to vector<16x8xf32>
    %cst_24 = arith.constant dense<0.000000e+00> : vector<2x8xf32>
    %26 = tpu.matmul %23, %25, %cst_24 {dimension_numbers = #tpu.dot_dimension_numbers<[1], [0], [0], [1], [0, 0, 1, 1], [], []>} : vector<2x16xf32>, vector<16x8xf32>, vector<2x8xf32> -> vector<2x8xf32>
    %c6 = arith.constant 6 : index
    %c0_25 = arith.constant 0 : index
    %27 = vector.load %arg3[%c6, %c0_25] : memref<8x8xf32, #tpu.memory_space<vmem>>, vector<2x8xf32>
    %28 = arith.addf %26, %27 : vector<2x8xf32>
    %c6_26 = arith.constant 6 : index
    %c0_27 = arith.constant 0 : index
    %29 = vector.load %arg7[%c6_26, %c0_27] : memref<8x8xf32, #tpu.memory_space<vmem>>, vector<2x8xf32>
    tpu.vector_store %arg7[%c6_26, %c0_27], %28 {strides = array<i32>} : memref<8x8xf32, #tpu.memory_space<vmem>>, vector<2x8xf32>,
    %c0_28 = arith.constant 0 : index
    %c0_29 = arith.constant 0 : index
    %30 = vector.load %arg7[%c0_28, %c0_29] : memref<8x8xf32, #tpu.memory_space<vmem>>, vector<8x8xf32>
    %c0_30 = arith.constant 0 : index
    %c0_31 = arith.constant 0 : index
    %c0_32 = arith.constant 0 : index
    %31 = vector.load %arg4[%c0_30, %c0_31, %c0_32] : memref<5x8x8xf32, #tpu.memory_space<vmem>>, vector<1x8x8xf32>
    %32 = vector.shape_cast %31 : vector<1x8x8xf32> to vector<8x8xf32>
    %cst_33 = arith.constant dense<0.000000e+00> : vector<8x8xf32>
    %33 = tpu.matmul %32, %30, %cst_33 {dimension_numbers = #tpu.dot_dimension_numbers<[1], [0], [0], [1], [0, 0, 1, 1], [], []>} : vector<8x8xf32>, vector<8x8xf32>, vector<8x8xf32> -> vector<8x8xf32>
    %c0_34 = arith.constant 0 : index
    %c0_35 = arith.constant 0 : index
    %c0_36 = arith.constant 0 : index
    %34 = vector.load %arg5[%c0_34, %c0_35, %c0_36] : memref<5x8x1xf32, #tpu.memory_space<vmem>>, vector<1x8x1xf32>
    %35 = vector.shape_cast %34 : vector<1x8x1xf32> to vector<8x1xf32>
    %36 = vector.broadcast %35 : vector<8x1xf32> to vector<8x8xf32>
    %37 = arith.addf %33, %36 : vector<8x8xf32>
    %cst_37 = arith.constant 5.000000e-01 : f32
    %38 = vector.broadcast %cst_37 : f32 to vector<8x8xf32>
    %39 = arith.mulf %38, %37 : vector<8x8xf32>
    %40 = math.tanh %39 : vector<8x8xf32>
    %cst_38 = arith.constant 5.000000e-01 : f32
    %41 = vector.broadcast %cst_38 : f32 to vector<8x8xf32>
    %42 = arith.mulf %41, %40 : vector<8x8xf32>
    %cst_39 = arith.constant 5.000000e-01 : f32
    %43 = vector.broadcast %cst_39 : f32 to vector<8x8xf32>
    %44 = arith.addf %43, %42 : vector<8x8xf32>
    %45 = arith.mulf %37, %44 : vector<8x8xf32>
    %c1_40 = arith.constant 1 : index
    %c0_41 = arith.constant 0 : index
    %c0_42 = arith.constant 0 : index
    %46 = vector.load %arg4[%c1_40, %c0_41, %c0_42] : memref<5x8x8xf32, #tpu.memory_space<vmem>>, vector<1x8x8xf32>
    %47 = vector.shape_cast %46 : vector<1x8x8xf32> to vector<8x8xf32>
    %cst_43 = arith.constant dense<0.000000e+00> : vector<8x8xf32>
    %48 = tpu.matmul %47, %45, %cst_43 {dimension_numbers = #tpu.dot_dimension_numbers<[1], [0], [0], [1], [0, 0, 1, 1], [], []>} : vector<8x8xf32>, vector<8x8xf32>, vector<8x8xf32> -> vector<8x8xf32>
    %c1_44 = arith.constant 1 : index
    %c0_45 = arith.constant 0 : index
    %c0_46 = arith.constant 0 : index
    %49 = vector.load %arg5[%c1_44, %c0_45, %c0_46] : memref<5x8x1xf32, #tpu.memory_space<vmem>>, vector<1x8x1xf32>
    %50 = vector.shape_cast %49 : vector<1x8x1xf32> to vector<8x1xf32>
    %51 = vector.broadcast %50 : vector<8x1xf32> to vector<8x8xf32>
    %52 = arith.addf %48, %51 : vector<8x8xf32>
    %cst_47 = arith.constant 5.000000e-01 : f32
    %53 = vector.broadcast %cst_47 : f32 to vector<8x8xf32>
    %54 = arith.mulf %53, %52 : vector<8x8xf32>
    %55 = math.tanh %54 : vector<8x8xf32>
    %cst_48 = arith.constant 5.000000e-01 : f32
    %56 = vector.broadcast %cst_48 : f32 to vector<8x8xf32>
    %57 = arith.mulf %56, %55 : vector<8x8xf32>
    %cst_49 = arith.constant 5.000000e-01 : f32
    %58 = vector.broadcast %cst_49 : f32 to vector<8x8xf32>
    %59 = arith.addf %58, %57 : vector<8x8xf32>
    %60 = arith.mulf %52, %59 : vector<8x8xf32>
    %c2_50 = arith.constant 2 : index
    %c0_51 = arith.constant 0 : index
    %c0_52 = arith.constant 0 : index
    %61 = vector.load %arg4[%c2_50, %c0_51, %c0_52] : memref<5x8x8xf32, #tpu.memory_space<vmem>>, vector<1x8x8xf32>
    %62 = vector.shape_cast %61 : vector<1x8x8xf32> to vector<8x8xf32>
    %cst_53 = arith.constant dense<0.000000e+00> : vector<8x8xf32>
    %63 = tpu.matmul %62, %60, %cst_53 {dimension_numbers = #tpu.dot_dimension_numbers<[1], [0], [0], [1], [0, 0, 1, 1], [], []>} : vector<8x8xf32>, vector<8x8xf32>, vector<8x8xf32> -> vector<8x8xf32>
    %c2_54 = arith.constant 2 : index
    %c0_55 = arith.constant 0 : index
    %c0_56 = arith.constant 0 : index
    %64 = vector.load %arg5[%c2_54, %c0_55, %c0_56] : memref<5x8x1xf32, #tpu.memory_space<vmem>>, vector<1x8x1xf32>
    %65 = vector.shape_cast %64 : vector<1x8x1xf32> to vector<8x1xf32>
    %66 = vector.broadcast %65 : vector<8x1xf32> to vector<8x8xf32>
    %67 = arith.addf %63, %66 : vector<8x8xf32>
    %cst_57 = arith.constant 5.000000e-01 : f32
    %68 = vector.broadcast %cst_57 : f32 to vector<8x8xf32>
    %69 = arith.mulf %68, %67 : vector<8x8xf32>
    %70 = math.tanh %69 : vector<8x8xf32>
    %cst_58 = arith.constant 5.000000e-01 : f32
    %71 = vector.broadcast %cst_58 : f32 to vector<8x8xf32>
    %72 = arith.mulf %71, %70 : vector<8x8xf32>
    %cst_59 = arith.constant 5.000000e-01 : f32
    %73 = vector.broadcast %cst_59 : f32 to vector<8x8xf32>
    %74 = arith.addf %73, %72 : vector<8x8xf32>
    %75 = arith.mulf %67, %74 : vector<8x8xf32>
    %c3_60 = arith.constant 3 : index
    %c0_61 = arith.constant 0 : index
    %c0_62 = arith.constant 0 : index
    %76 = vector.load %arg4[%c3_60, %c0_61, %c0_62] : memref<5x8x8xf32, #tpu.memory_space<vmem>>, vector<1x8x8xf32>
    %77 = vector.shape_cast %76 : vector<1x8x8xf32> to vector<8x8xf32>
    %cst_63 = arith.constant dense<0.000000e+00> : vector<8x8xf32>
    %78 = tpu.matmul %77, %75, %cst_63 {dimension_numbers = #tpu.dot_dimension_numbers<[1], [0], [0], [1], [0, 0, 1, 1], [], []>} : vector<8x8xf32>, vector<8x8xf32>, vector<8x8xf32> -> vector<8x8xf32>
    %c3_64 = arith.constant 3 : index
    %c0_65 = arith.constant 0 : index
    %c0_66 = arith.constant 0 : index
    %79 = vector.load %arg5[%c3_64, %c0_65, %c0_66] : memref<5x8x1xf32, #tpu.memory_space<vmem>>, vector<1x8x1xf32>
    %80 = vector.shape_cast %79 : vector<1x8x1xf32> to vector<8x1xf32>
    %81 = vector.broadcast %80 : vector<8x1xf32> to vector<8x8xf32>
    %82 = arith.addf %78, %81 : vector<8x8xf32>
    %cst_67 = arith.constant 5.000000e-01 : f32
    %83 = vector.broadcast %cst_67 : f32 to vector<8x8xf32>
    %84 = arith.mulf %83, %82 : vector<8x8xf32>
    %85 = math.tanh %84 : vector<8x8xf32>
    %cst_68 = arith.constant 5.000000e-01 : f32
    %86 = vector.broadcast %cst_68 : f32 to vector<8x8xf32>
    %87 = arith.mulf %86, %85 : vector<8x8xf32>
    %cst_69 = arith.constant 5.000000e-01 : f32
    %88 = vector.broadcast %cst_69 : f32 to vector<8x8xf32>
    %89 = arith.addf %88, %87 : vector<8x8xf32>
    %90 = arith.mulf %82, %89 : vector<8x8xf32>
    %c4_70 = arith.constant 4 : index
    %c0_71 = arith.constant 0 : index
    %c0_72 = arith.constant 0 : index
    %91 = vector.load %arg4[%c4_70, %c0_71, %c0_72] : memref<5x8x8xf32, #tpu.memory_space<vmem>>, vector<1x8x8xf32>
    %92 = vector.shape_cast %91 : vector<1x8x8xf32> to vector<8x8xf32>
    %cst_73 = arith.constant dense<0.000000e+00> : vector<8x8xf32>
    %93 = tpu.matmul %92, %90, %cst_73 {dimension_numbers = #tpu.dot_dimension_numbers<[1], [0], [0], [1], [0, 0, 1, 1], [], []>} : vector<8x8xf32>, vector<8x8xf32>, vector<8x8xf32> -> vector<8x8xf32>
    %c4_74 = arith.constant 4 : index
    %c0_75 = arith.constant 0 : index
    %c0_76 = arith.constant 0 : index
    %94 = vector.load %arg5[%c4_74, %c0_75, %c0_76] : memref<5x8x1xf32, #tpu.memory_space<vmem>>, vector<1x8x1xf32>
    %95 = vector.shape_cast %94 : vector<1x8x1xf32> to vector<8x1xf32>
    %96 = vector.broadcast %95 : vector<8x1xf32> to vector<8x8xf32>
    %97 = arith.addf %93, %96 : vector<8x8xf32>
    %cst_77 = arith.constant 5.000000e-01 : f32
    %98 = vector.broadcast %cst_77 : f32 to vector<8x8xf32>
    %99 = arith.mulf %98, %97 : vector<8x8xf32>
    %100 = math.tanh %99 : vector<8x8xf32>
    %cst_78 = arith.constant 5.000000e-01 : f32
    %101 = vector.broadcast %cst_78 : f32 to vector<8x8xf32>
    %102 = arith.mulf %101, %100 : vector<8x8xf32>
    %cst_79 = arith.constant 5.000000e-01 : f32
    %103 = vector.broadcast %cst_79 : f32 to vector<8x8xf32>
    %104 = arith.addf %103, %102 : vector<8x8xf32>
    %105 = arith.mulf %97, %104 : vector<8x8xf32>
    %106 = vector.extract_strided_slice %105 {offsets = [0, 0], sizes = [2, 8], strides = [1, 1]} : vector<8x8xf32> to vector<2x8xf32>
    %c0_80 = arith.constant 0 : index
    %c0_81 = arith.constant 0 : index
    %c0_82 = arith.constant 0 : index
    %c0_83 = arith.constant 0 : index
    %107 = vector.load %arg6[%c0_80, %c0_81, %c0_82, %c0_83] : memref<4x1x2x8xf32, #tpu.memory_space<vmem>>, vector<1x1x2x8xf32>
    %108 = vector.shape_cast %107 : vector<1x1x2x8xf32> to vector<2x8xf32>
    %109 = vector.shape_cast %106 : vector<2x8xf32> to vector<1x1x2x8xf32>
    tpu.vector_store %arg6[%c0_80, %c0_81, %c0_82, %c0_83], %109 {strides = array<i32>} : memref<4x1x2x8xf32, #tpu.memory_space<vmem>>, vector<1x1x2x8xf32>,
    %110 = vector.extract_strided_slice %105 {offsets = [2, 0], sizes = [2, 8], strides = [1, 1]} : vector<8x8xf32> to vector<2x8xf32>
    %c1_84 = arith.constant 1 : index
    %c0_85 = arith.constant 0 : index
    %c0_86 = arith.constant 0 : index
    %c0_87 = arith.constant 0 : index
    %111 = vector.load %arg6[%c1_84, %c0_85, %c0_86, %c0_87] : memref<4x1x2x8xf32, #tpu.memory_space<vmem>>, vector<1x1x2x8xf32>
    %112 = vector.shape_cast %111 : vector<1x1x2x8xf32> to vector<2x8xf32>
    %113 = vector.shape_cast %110 : vector<2x8xf32> to vector<1x1x2x8xf32>
    tpu.vector_store %arg6[%c1_84, %c0_85, %c0_86, %c0_87], %113 {strides = array<i32>} : memref<4x1x2x8xf32, #tpu.memory_space<vmem>>, vector<1x1x2x8xf32>,
    %114 = vector.extract_strided_slice %105 {offsets = [4, 0], sizes = [2, 8], strides = [1, 1]} : vector<8x8xf32> to vector<2x8xf32>
    %c2_88 = arith.constant 2 : index
    %c0_89 = arith.constant 0 : index
    %c0_90 = arith.constant 0 : index
    %c0_91 = arith.constant 0 : index
    %115 = vector.load %arg6[%c2_88, %c0_89, %c0_90, %c0_91] : memref<4x1x2x8xf32, #tpu.memory_space<vmem>>, vector<1x1x2x8xf32>
    %116 = vector.shape_cast %115 : vector<1x1x2x8xf32> to vector<2x8xf32>
    %117 = vector.shape_cast %114 : vector<2x8xf32> to vector<1x1x2x8xf32>
    tpu.vector_store %arg6[%c2_88, %c0_89, %c0_90, %c0_91], %117 {strides = array<i32>} : memref<4x1x2x8xf32, #tpu.memory_space<vmem>>, vector<1x1x2x8xf32>,
    %118 = vector.extract_strided_slice %105 {offsets = [6, 0], sizes = [2, 8], strides = [1, 1]} : vector<8x8xf32> to vector<2x8xf32>
    %c3_92 = arith.constant 3 : index
    %c0_93 = arith.constant 0 : index
    %c0_94 = arith.constant 0 : index
    %c0_95 = arith.constant 0 : index
    %119 = vector.load %arg6[%c3_92, %c0_93, %c0_94, %c0_95] : memref<4x1x2x8xf32, #tpu.memory_space<vmem>>, vector<1x1x2x8xf32>
    %120 = vector.shape_cast %119 : vector<1x1x2x8xf32> to vector<2x8xf32>
    %121 = vector.shape_cast %118 : vector<2x8xf32> to vector<1x1x2x8xf32>
    tpu.vector_store %arg6[%c3_92, %c0_93, %c0_94, %c0_95], %121 {strides = array<i32>} : memref<4x1x2x8xf32, #tpu.memory_space<vmem>>, vector<1x1x2x8xf32>,
    return
  }
  func.func @transform_0(%arg0: i32) -> (i32, i32, i32) {
    %c0_i32 = arith.constant 0 : i32
    %c0_i32_0 = arith.constant 0 : i32
    %c0_i32_1 = arith.constant 0 : i32
    return %arg0, %c0_i32, %c0_i32_0 : i32, i32, i32
  }
  func.func @transform_1(%arg0: i32) -> (i32, i32, i32) {
    %c0_i32 = arith.constant 0 : i32
    %c0_i32_0 = arith.constant 0 : i32
    %c0_i32_1 = arith.constant 0 : i32
    %c0_i32_2 = arith.constant 0 : i32
    return %c0_i32, %c0_i32_0, %c0_i32_1 : i32, i32, i32
  }
  func.func @transform_2(%arg0: i32) -> (i32, i32) {
    %c0_i32 = arith.constant 0 : i32
    %c0_i32_0 = arith.constant 0 : i32
    %c0_i32_1 = arith.constant 0 : i32
    return %c0_i32, %c0_i32_0 : i32, i32
  }
  func.func @transform_3(%arg0: i32) -> (i32, i32, i32) {
    %c0_i32 = arith.constant 0 : i32
    %c0_i32_0 = arith.constant 0 : i32
    %c0_i32_1 = arith.constant 0 : i32
    %c0_i32_2 = arith.constant 0 : i32
    return %c0_i32, %c0_i32_0, %c0_i32_1 : i32, i32, i32
  }
  func.func @transform_4(%arg0: i32) -> (i32, i32, i32) {
    %c0_i32 = arith.constant 0 : i32
    %c0_i32_0 = arith.constant 0 : i32
    %c0_i32_1 = arith.constant 0 : i32
    %c0_i32_2 = arith.constant 0 : i32
    return %c0_i32, %c0_i32_0, %c0_i32_1 : i32, i32, i32
  }
  func.func @transform_5(%arg0: i32) -> (i32, i32, i32, i32) {
    %c0_i32 = arith.constant 0 : i32
    %c0_i32_0 = arith.constant 0 : i32
    %c0_i32_1 = arith.constant 0 : i32
    %c0_i32_2 = arith.constant 0 : i32
    return %c0_i32, %arg0, %c0_i32_0, %c0_i32_1 : i32, i32, i32, i32
  }
}

module attributes {stable_mosaic.version = 11 : i64} {
  func.func @_rxa_bn_kernel(%arg0: i32, %arg1: memref<2x2x16xf32, #tpu.memory_space<vmem>>, %arg2: memref<2x16x8xf32, #tpu.memory_space<vmem>>, %arg3: memref<2x1x8xf32, #tpu.memory_space<vmem>>, %arg4: memref<2x1x1xf32, #tpu.memory_space<vmem>>, %arg5: memref<2x1x1xf32, #tpu.memory_space<vmem>>, %arg6: memref<2x2x8xf32, #tpu.memory_space<vmem>>) attributes {dimension_semantics = [#tpu.dimension_semantics<parallel>], iteration_bounds = array<i64: 2>, scalar_prefetch = 0 : i64, scratch_operands = 0 : i64, tpu.core_type = #tpu.core_type<tc>, window_params = [{transform_indices = @transform_0, window_bounds = array<i64: 2, 2, 16>}, {transform_indices = @transform_1, window_bounds = array<i64: 2, 16, 8>}, {transform_indices = @transform_2, window_bounds = array<i64: 2, 1, 8>}, {transform_indices = @transform_3, window_bounds = array<i64: 2, 1, 1>}, {transform_indices = @transform_4, window_bounds = array<i64: 2, 1, 1>}, {transform_indices = @transform_5, window_bounds = array<i64: 2, 2, 8>}]} {
    %c0 = arith.constant 0 : index
    %c0_0 = arith.constant 0 : index
    %c0_1 = arith.constant 0 : index
    %0 = vector.load %arg1[%c0, %c0_0, %c0_1] : memref<2x2x16xf32, #tpu.memory_space<vmem>>, vector<1x2x16xf32>
    %1 = vector.shape_cast %0 : vector<1x2x16xf32> to vector<2x16xf32>
    %c0_2 = arith.constant 0 : index
    %c0_3 = arith.constant 0 : index
    %c0_4 = arith.constant 0 : index
    %2 = vector.load %arg2[%c0_2, %c0_3, %c0_4] : memref<2x16x8xf32, #tpu.memory_space<vmem>>, vector<1x16x8xf32>
    %3 = vector.shape_cast %2 : vector<1x16x8xf32> to vector<16x8xf32>
    %cst = arith.constant dense<0.000000e+00> : vector<2x8xf32>
    %4 = tpu.matmul %1, %3, %cst {dimension_numbers = #tpu.dot_dimension_numbers<[1], [0], [0], [1], [0, 0, 1, 1], [], []>} : vector<2x16xf32>, vector<16x8xf32>, vector<2x8xf32> -> vector<2x8xf32>
    %c0_5 = arith.constant 0 : index
    %c0_6 = arith.constant 0 : index
    %c0_7 = arith.constant 0 : index
    %5 = vector.load %arg3[%c0_5, %c0_6, %c0_7] : memref<2x1x8xf32, #tpu.memory_space<vmem>>, vector<1x1x8xf32>
    %6 = vector.shape_cast %5 : vector<1x1x8xf32> to vector<1x8xf32>
    %7 = vector.broadcast %6 : vector<1x8xf32> to vector<2x8xf32>
    %8 = arith.addf %4, %7 : vector<2x8xf32>
    %cst_8 = arith.constant dense<0.000000e+00> : vector<2xf32>
    %9 = vector.multi_reduction <add>, %8, %cst_8 [1] : vector<2x8xf32> to vector<2xf32>
    %10 = vector.shape_cast %9 : vector<2xf32> to vector<2x1xf32>
    %cst_9 = arith.constant dense<0.000000e+00> : vector<1xf32>
    %11 = vector.multi_reduction <add>, %10, %cst_9 [0] : vector<2x1xf32> to vector<1xf32>
    %12 = vector.shape_cast %11 : vector<1xf32> to vector<1x1xf32>
    %cst_10 = arith.constant 6.250000e-02 : f32
    %13 = vector.broadcast %cst_10 : f32 to vector<1x1xf32>
    %14 = arith.mulf %12, %13 : vector<1x1xf32>
    %15 = vector.broadcast %14 : vector<1x1xf32> to vector<2x8xf32>
    %16 = arith.subf %8, %15 : vector<2x8xf32>
    %17 = arith.mulf %16, %16 : vector<2x8xf32>
    %cst_11 = arith.constant dense<0.000000e+00> : vector<2xf32>
    %18 = vector.multi_reduction <add>, %17, %cst_11 [1] : vector<2x8xf32> to vector<2xf32>
    %19 = vector.shape_cast %18 : vector<2xf32> to vector<2x1xf32>
    %cst_12 = arith.constant dense<0.000000e+00> : vector<1xf32>
    %20 = vector.multi_reduction <add>, %19, %cst_12 [0] : vector<2x1xf32> to vector<1xf32>
    %21 = vector.shape_cast %20 : vector<1xf32> to vector<1x1xf32>
    %cst_13 = arith.constant 6.250000e-02 : f32
    %22 = vector.broadcast %cst_13 : f32 to vector<1x1xf32>
    %23 = arith.mulf %21, %22 : vector<1x1xf32>
    %cst_14 = arith.constant 9.99999974E-6 : f32
    %24 = vector.broadcast %cst_14 : f32 to vector<1x1xf32>
    %25 = arith.addf %23, %24 : vector<1x1xf32>
    %26 = math.rsqrt %25 : vector<1x1xf32>
    %c0_15 = arith.constant 0 : index
    %c0_16 = arith.constant 0 : index
    %c0_17 = arith.constant 0 : index
    %27 = vector.load %arg4[%c0_15, %c0_16, %c0_17] : memref<2x1x1xf32, #tpu.memory_space<vmem>>, vector<1x1x1xf32>
    %28 = vector.shape_cast %27 : vector<1x1x1xf32> to vector<1x1xf32>
    %29 = vector.broadcast %26 : vector<1x1xf32> to vector<2x8xf32>
    %30 = arith.mulf %16, %29 : vector<2x8xf32>
    %31 = vector.broadcast %28 : vector<1x1xf32> to vector<2x8xf32>
    %32 = arith.mulf %31, %30 : vector<2x8xf32>
    %c0_18 = arith.constant 0 : index
    %c0_19 = arith.constant 0 : index
    %c0_20 = arith.constant 0 : index
    %33 = vector.load %arg5[%c0_18, %c0_19, %c0_20] : memref<2x1x1xf32, #tpu.memory_space<vmem>>, vector<1x1x1xf32>
    %34 = vector.shape_cast %33 : vector<1x1x1xf32> to vector<1x1xf32>
    %35 = vector.broadcast %34 : vector<1x1xf32> to vector<2x8xf32>
    %36 = arith.addf %32, %35 : vector<2x8xf32>
    %c0_21 = arith.constant 0 : index
    %c0_22 = arith.constant 0 : index
    %c0_23 = arith.constant 0 : index
    %37 = vector.load %arg6[%c0_21, %c0_22, %c0_23] : memref<2x2x8xf32, #tpu.memory_space<vmem>>, vector<1x2x8xf32>
    %38 = vector.shape_cast %37 : vector<1x2x8xf32> to vector<2x8xf32>
    %39 = vector.shape_cast %36 : vector<2x8xf32> to vector<1x2x8xf32>
    tpu.vector_store %arg6[%c0_21, %c0_22, %c0_23], %39 {strides = array<i32>} : memref<2x2x8xf32, #tpu.memory_space<vmem>>, vector<1x2x8xf32>,
    %c1 = arith.constant 1 : index
    %c0_24 = arith.constant 0 : index
    %c0_25 = arith.constant 0 : index
    %40 = vector.load %arg1[%c1, %c0_24, %c0_25] : memref<2x2x16xf32, #tpu.memory_space<vmem>>, vector<1x2x16xf32>
    %41 = vector.shape_cast %40 : vector<1x2x16xf32> to vector<2x16xf32>
    %c1_26 = arith.constant 1 : index
    %c0_27 = arith.constant 0 : index
    %c0_28 = arith.constant 0 : index
    %42 = vector.load %arg2[%c1_26, %c0_27, %c0_28] : memref<2x16x8xf32, #tpu.memory_space<vmem>>, vector<1x16x8xf32>
    %43 = vector.shape_cast %42 : vector<1x16x8xf32> to vector<16x8xf32>
    %cst_29 = arith.constant dense<0.000000e+00> : vector<2x8xf32>
    %44 = tpu.matmul %41, %43, %cst_29 {dimension_numbers = #tpu.dot_dimension_numbers<[1], [0], [0], [1], [0, 0, 1, 1], [], []>} : vector<2x16xf32>, vector<16x8xf32>, vector<2x8xf32> -> vector<2x8xf32>
    %c1_30 = arith.constant 1 : index
    %c0_31 = arith.constant 0 : index
    %c0_32 = arith.constant 0 : index
    %45 = vector.load %arg3[%c1_30, %c0_31, %c0_32] : memref<2x1x8xf32, #tpu.memory_space<vmem>>, vector<1x1x8xf32>
    %46 = vector.shape_cast %45 : vector<1x1x8xf32> to vector<1x8xf32>
    %47 = vector.broadcast %46 : vector<1x8xf32> to vector<2x8xf32>
    %48 = arith.addf %44, %47 : vector<2x8xf32>
    %cst_33 = arith.constant dense<0.000000e+00> : vector<2xf32>
    %49 = vector.multi_reduction <add>, %48, %cst_33 [1] : vector<2x8xf32> to vector<2xf32>
    %50 = vector.shape_cast %49 : vector<2xf32> to vector<2x1xf32>
    %cst_34 = arith.constant dense<0.000000e+00> : vector<1xf32>
    %51 = vector.multi_reduction <add>, %50, %cst_34 [0] : vector<2x1xf32> to vector<1xf32>
    %52 = vector.shape_cast %51 : vector<1xf32> to vector<1x1xf32>
    %cst_35 = arith.constant 6.250000e-02 : f32
    %53 = vector.broadcast %cst_35 : f32 to vector<1x1xf32>
    %54 = arith.mulf %52, %53 : vector<1x1xf32>
    %55 = vector.broadcast %54 : vector<1x1xf32> to vector<2x8xf32>
    %56 = arith.subf %48, %55 : vector<2x8xf32>
    %57 = arith.mulf %56, %56 : vector<2x8xf32>
    %cst_36 = arith.constant dense<0.000000e+00> : vector<2xf32>
    %58 = vector.multi_reduction <add>, %57, %cst_36 [1] : vector<2x8xf32> to vector<2xf32>
    %59 = vector.shape_cast %58 : vector<2xf32> to vector<2x1xf32>
    %cst_37 = arith.constant dense<0.000000e+00> : vector<1xf32>
    %60 = vector.multi_reduction <add>, %59, %cst_37 [0] : vector<2x1xf32> to vector<1xf32>
    %61 = vector.shape_cast %60 : vector<1xf32> to vector<1x1xf32>
    %cst_38 = arith.constant 6.250000e-02 : f32
    %62 = vector.broadcast %cst_38 : f32 to vector<1x1xf32>
    %63 = arith.mulf %61, %62 : vector<1x1xf32>
    %cst_39 = arith.constant 9.99999974E-6 : f32
    %64 = vector.broadcast %cst_39 : f32 to vector<1x1xf32>
    %65 = arith.addf %63, %64 : vector<1x1xf32>
    %66 = math.rsqrt %65 : vector<1x1xf32>
    %c1_40 = arith.constant 1 : index
    %c0_41 = arith.constant 0 : index
    %c0_42 = arith.constant 0 : index
    %67 = vector.load %arg4[%c1_40, %c0_41, %c0_42] : memref<2x1x1xf32, #tpu.memory_space<vmem>>, vector<1x1x1xf32>
    %68 = vector.shape_cast %67 : vector<1x1x1xf32> to vector<1x1xf32>
    %69 = vector.broadcast %66 : vector<1x1xf32> to vector<2x8xf32>
    %70 = arith.mulf %56, %69 : vector<2x8xf32>
    %71 = vector.broadcast %68 : vector<1x1xf32> to vector<2x8xf32>
    %72 = arith.mulf %71, %70 : vector<2x8xf32>
    %c1_43 = arith.constant 1 : index
    %c0_44 = arith.constant 0 : index
    %c0_45 = arith.constant 0 : index
    %73 = vector.load %arg5[%c1_43, %c0_44, %c0_45] : memref<2x1x1xf32, #tpu.memory_space<vmem>>, vector<1x1x1xf32>
    %74 = vector.shape_cast %73 : vector<1x1x1xf32> to vector<1x1xf32>
    %75 = vector.broadcast %74 : vector<1x1xf32> to vector<2x8xf32>
    %76 = arith.addf %72, %75 : vector<2x8xf32>
    %c1_46 = arith.constant 1 : index
    %c0_47 = arith.constant 0 : index
    %c0_48 = arith.constant 0 : index
    %77 = vector.load %arg6[%c1_46, %c0_47, %c0_48] : memref<2x2x8xf32, #tpu.memory_space<vmem>>, vector<1x2x8xf32>
    %78 = vector.shape_cast %77 : vector<1x2x8xf32> to vector<2x8xf32>
    %79 = vector.shape_cast %76 : vector<2x8xf32> to vector<1x2x8xf32>
    tpu.vector_store %arg6[%c1_46, %c0_47, %c0_48], %79 {strides = array<i32>} : memref<2x2x8xf32, #tpu.memory_space<vmem>>, vector<1x2x8xf32>,
    return
  }
  func.func @transform_0(%arg0: i32) -> (i32, i32, i32) {
    %c0_i32 = arith.constant 0 : i32
    %c0_i32_0 = arith.constant 0 : i32
    %c0_i32_1 = arith.constant 0 : i32
    return %arg0, %c0_i32, %c0_i32_0 : i32, i32, i32
  }
  func.func @transform_1(%arg0: i32) -> (i32, i32, i32) {
    %c0_i32 = arith.constant 0 : i32
    %c0_i32_0 = arith.constant 0 : i32
    %c0_i32_1 = arith.constant 0 : i32
    return %arg0, %c0_i32, %c0_i32_0 : i32, i32, i32
  }
  func.func @transform_2(%arg0: i32) -> (i32, i32, i32) {
    %c0_i32 = arith.constant 0 : i32
    %c0_i32_0 = arith.constant 0 : i32
    %c0_i32_1 = arith.constant 0 : i32
    return %arg0, %c0_i32, %c0_i32_0 : i32, i32, i32
  }
  func.func @transform_3(%arg0: i32) -> (i32, i32, i32) {
    %c0_i32 = arith.constant 0 : i32
    %c0_i32_0 = arith.constant 0 : i32
    %c0_i32_1 = arith.constant 0 : i32
    return %arg0, %c0_i32, %c0_i32_0 : i32, i32, i32
  }
  func.func @transform_4(%arg0: i32) -> (i32, i32, i32) {
    %c0_i32 = arith.constant 0 : i32
    %c0_i32_0 = arith.constant 0 : i32
    %c0_i32_1 = arith.constant 0 : i32
    return %arg0, %c0_i32, %c0_i32_0 : i32, i32, i32
  }
  func.func @transform_5(%arg0: i32) -> (i32, i32, i32) {
    %c0_i32 = arith.constant 0 : i32
    %c0_i32_0 = arith.constant 0 : i32
    %c0_i32_1 = arith.constant 0 : i32
    return %arg0, %c0_i32, %c0_i32_0 : i32, i32, i32
  }
}

</mosaic_0001>

<llo_original>
// kernel: multi_channel_mlp_prepared.3
$region0: #{multi_channel_mlp_prepared.3}
  #allocation0 [shape = 'u32[]', space=smem, size = 0x4, offset = 0x4, fixed_abs, tag = 'smem constant byte address 0x4 - core index']
  #allocation1 [shape = 'u32[144,128]{1,0:T(1,128)}', space=vmem, size = 0x12000, scoped, tag = 'internal scratch']
  %s0 = inlined_call_operand.vmem [shape: f32[4,2,16], index: 0, kind: input, shape index: {}]
  %s1 = inlined_call_operand.vmem [shape: f32[4,16,8], index: 1, kind: input, shape index: {}]
  %s2 = inlined_call_operand.vmem [shape: f32[4,1,8], index: 2, kind: input, shape index: {}]
  %s3 = inlined_call_operand.vmem [shape: f32[4,1,1], index: 3, kind: input, shape index: {}]
  %s4 = inlined_call_operand.vmem [shape: f32[4,1,1], index: 4, kind: input, shape index: {}]
  %s5 = inlined_call_operand.vmem [shape: f32[4,2,8], index: 5, kind: output, shape index: {}]
  %s6 = sld [smem:[#allocation0]]
  $region53: #{multi_channel_mlp_prepared.3} parent=0
    _
  %s8 = ssub.s32 1, %s6
  %s9 = scalar_select 0, %s8, %s6
  loop: start=0, step=1, limit=4
  $region2: #{multi_channel_mlp_prepared.3} parent=0 // loop_pre_header
    _
  $region3: #{multi_channel_mlp_prepared.3} parent=0 // loop_header
    %s11 = sphi 0, %s15
    %p12 = scmp.ge.s32.totalorder %s11, 4
    %s21 = sphi 0, %s23
    %s24 = sphi 0, %s21
    %s25 = sphi 0, %s24
    %s41 = sphi 0, %s25
    %s47 = sphi 0, %s49
    %s50 = sphi 0, %s47
    %s51 = sphi 0, %s50
    %s67 = sphi 0, %s51
    %s73 = sphi 0, %s75
    %s76 = sphi 0, %s73
    %s77 = sphi 0, %s76
    %s93 = sphi 0, %s77
    %s99 = sphi 0, %s101
    %s102 = sphi 0, %s99
    %s103 = sphi 0, %s102
    %s119 = sphi 0, %s103
    %s125 = sphi 0, %s127
    %s128 = sphi 0, %s125
    %s129 = sphi 0, %s128
    %s145 = sphi 0, %s129
    %s151 = sphi 0, %s153
    %s154 = sphi 0, %s151
    %s155 = sphi 0, %s154
    %s171 = sphi 0, %s155
  $region4: #{multi_channel_mlp_prepared.3} parent=0 // loop_header_branch
    %14 = sbr.rel (%p12) target = $region8
  $region5: #{multi_channel_mlp_prepared.3} parent=0 // loop_body
    %s16 = ssub.s32 %s11, 1
    %s17 = ssub.s32 %s11, 2
    %s18 = sadd.s32 %s11, 1
    %s19 = ssub.s32 %s11, %s18
    %p20 = scmp.eq.s32.totalorder %s19, 0
    %s22 = sadd.s32 %s21, 1
    %s23 = scalar_select %p20, %s21, %s22
    %p26 = pneg %p20
    %p27 = scmp.eq.s32.totalorder %s11, 1
    %p28 = por %p26, %p27
    %p29 = scmp.ne.s32.totalorder %s21, %s24
    %p30 = scmp.eq.s32.totalorder %s11, 0
    %p31 = por %p29, %p30
    %p32 = scmp.ne.s32.totalorder %s21, %s24
    %p33 = scmp.eq.s32.totalorder %s16, 1
    %p34 = por %p32, %p33
    %p35 = scmp.ne.s32.totalorder %s24, %s25
    %p36 = scmp.eq.s32.totalorder %s16, 0
    %p37 = por %p35, %p36
    %p38 = scmp.ne.s32.totalorder %s24, %s25
    %p39 = scmp.eq.s32.totalorder %s17, 1
    %p40 = por %p38, %p39
    %p42 = scmp.ne.s32.totalorder %s25, %s41
    %p43 = scmp.eq.s32.totalorder %s17, 0
    %p44 = por %p42, %p43
    %s45 = ssub.s32 %s11, %s18
    %p46 = scmp.eq.s32.totalorder %s45, 0
    %s48 = sadd.s32 %s47, 1
    %s49 = scalar_select %p46, %s47, %s48
    %p52 = pneg %p46
    %p53 = scmp.eq.s32.totalorder %s11, 1
    %p54 = por %p52, %p53
    %p55 = scmp.ne.s32.totalorder %s47, %s50
    %p56 = scmp.eq.s32.totalorder %s11, 0
    %p57 = por %p55, %p56
    %p58 = scmp.ne.s32.totalorder %s47, %s50
    %p59 = scmp.eq.s32.totalorder %s16, 1
    %p60 = por %p58, %p59
    %p61 = scmp.ne.s32.totalorder %s50, %s51
    %p62 = scmp.eq.s32.totalorder %s16, 0
    %p63 = por %p61, %p62
    %p64 = scmp.ne.s32.totalorder %s50, %s51
    %p65 = scmp.eq.s32.totalorder %s17, 1
    %p66 = por %p64, %p65
    %p68 = scmp.ne.s32.totalorder %s51, %s67
    %p69 = scmp.eq.s32.totalorder %s17, 0
    %p70 = por %p68, %p69
    %s71 = ssub.s32 %s11, %s18
    %p72 = scmp.eq.s32.totalorder %s71, 0
    %s74 = sadd.s32 %s73, 1
    %s75 = scalar_select %p72, %s73, %s74
    %p78 = pneg %p72
    %p79 = scmp.eq.s32.totalorder %s11, 1
    %p80 = por %p78, %p79
    %p81 = scmp.ne.s32.totalorder %s73, %s76
    %p82 = scmp.eq.s32.totalorder %s11, 0
    %p83 = por %p81, %p82
    %p84 = scmp.ne.s32.totalorder %s73, %s76
    %p85 = scmp.eq.s32.totalorder %s16, 1
    %p86 = por %p84, %p85
    %p87 = scmp.ne.s32.totalorder %s76, %s77
    %p88 = scmp.eq.s32.totalorder %s16, 0
    %p89 = por %p87, %p88
    %p90 = scmp.ne.s32.totalorder %s76, %s77
    %p91 = scmp.eq.s32.totalorder %s17, 1
    %p92 = por %p90, %p91
    %p94 = scmp.ne.s32.totalorder %s77, %s93
    %p95 = scmp.eq.s32.totalorder %s17, 0
    %p96 = por %p94, %p95
    %s97 = ssub.s32 %s11, %s18
    %p98 = scmp.eq.s32.totalorder %s97, 0
    %s100 = sadd.s32 %s99, 1
    %s101 = scalar_select %p98, %s99, %s100
    %p104 = pneg %p98
    %p105 = scmp.eq.s32.totalorder %s11, 1
    %p106 = por %p104, %p105
    %p107 = scmp.ne.s32.totalorder %s99, %s102
    %p108 = scmp.eq.s32.totalorder %s11, 0
    %p109 = por %p107, %p108
    %p110 = scmp.ne.s32.totalorder %s99, %s102
    %p111 = scmp.eq.s32.totalorder %s16, 1
    %p112 = por %p110, %p111
    %p113 = scmp.ne.s32.totalorder %s102, %s103
    %p114 = scmp.eq.s32.totalorder %s16, 0
    %p115 = por %p113, %p114
    %p116 = scmp.ne.s32.totalorder %s102, %s103
    %p117 = scmp.eq.s32.totalorder %s17, 1
    %p118 = por %p116, %p117
    %p120 = scmp.ne.s32.totalorder %s103, %s119
    %p121 = scmp.eq.s32.totalorder %s17, 0
    %p122 = por %p120, %p121
    %s123 = ssub.s32 %s11, %s18
    %p124 = scmp.eq.s32.totalorder %s123, 0
    %s126 = sadd.s32 %s125, 1
    %s127 = scalar_select %p124, %s125, %s126
    %p130 = pneg %p124
    %p131 = scmp.eq.s32.totalorder %s11, 1
    %p132 = por %p130, %p131
    %p133 = scmp.ne.s32.totalorder %s125, %s128
    %p134 = scmp.eq.s32.totalorder %s11, 0
    %p135 = por %p133, %p134
    %p136 = scmp.ne.s32.totalorder %s125, %s128
    %p137 = scmp.eq.s32.totalorder %s16, 1
    %p138 = por %p136, %p137
    %p139 = scmp.ne.s32.totalorder %s128, %s129
    %p140 = scmp.eq.s32.totalorder %s16, 0
    %p141 = por %p139, %p140
    %p142 = scmp.ne.s32.totalorder %s128, %s129
    %p143 = scmp.eq.s32.totalorder %s17, 1
    %p144 = por %p142, %p143
    %p146 = scmp.ne.s32.totalorder %s129, %s145
    %p147 = scmp.eq.s32.totalorder %s17, 0
    %p148 = por %p146, %p147
    %s149 = ssub.s32 %s11, %s18
    %p150 = scmp.eq.s32.totalorder %s149, 0
    %s152 = sadd.s32 %s151, 1
    %s153 = scalar_select %p150, %s151, %s152
    %p156 = pneg %p150
    %p157 = scmp.eq.s32.totalorder %s11, 1
    %p158 = por %p156, %p157
    %p159 = scmp.ne.s32.totalorder %s151, %s154
    %p160 = scmp.eq.s32.totalorder %s11, 0
    %p161 = por %p159, %p160
    %p162 = scmp.ne.s32.totalorder %s151, %s154
    %p163 = scmp.eq.s32.totalorder %s16, 1
    %p164 = por %p162, %p163
    %p165 = scmp.ne.s32.totalorder %s154, %s155
    %p166 = scmp.eq.s32.totalorder %s16, 0
    %p167 = por %p165, %p166
    %p168 = scmp.ne.s32.totalorder %s154, %s155
    %p169 = scmp.eq.s32.totalorder %s17, 1
    %p170 = por %p168, %p169
    %p172 = scmp.ne.s32.totalorder %s155, %s171
    %p173 = scmp.eq.s32.totalorder %s17, 0
    %p174 = por %p172, %p173
    %p175 = scmp.le.s32.totalorder 1, %s11
    %p176 = scmp.lt.s32.totalorder %s11, 3
    %p177 = pnand %p175, %p176
    %p178 = pneg %p177
    // Predicated region
    $region9: #{multi_channel_mlp_prepared.3} parent=5 // pred_check
      _
    $region10: #{multi_channel_mlp_prepared.3} parent=5 // pred_check_branch
      %180 = sbr.rel (%p177) target = $region12
    $region11: #{multi_channel_mlp_prepared.3} parent=5 // pred_region
      %s181 = ssub.s32 %s11, 1
    $region12: #{multi_channel_mlp_prepared.3} parent=5 // pred_fallthru
      _
    %p182 = scmp.lt.s32.totalorder %s11, 2
    // Predicated region
    $region13: #{multi_channel_mlp_prepared.3} parent=5 // pred_check
      %p183 = pneg %p182
    $region14: #{multi_channel_mlp_prepared.3} parent=5 // pred_check_branch
      %185 = sbr.rel (%p183) target = $region16
    $region15: #{multi_channel_mlp_prepared.3} parent=5 // pred_region
      // Predicated region
      $region17: #{multi_channel_mlp_prepared.3} parent=15 // pred_check
        %p186 = pneg %p31
      $region18: #{multi_channel_mlp_prepared.3} parent=15 // pred_check_branch
        %188 = sbr.rel (%p186) target = $region20
      $region19: #{multi_channel_mlp_prepared.3} parent=15 // pred_region
        %s189 = smul.u32 2, %s11
        %p190 = scmp.lt.s32.totalorder %s189, 3
        %s191 = scalar_select %p190, %s189, 3
        %s192 = smul.addr %s191, 2
        %s193 = scalar_lea.vmem %s0, %s192
        %s194 = smul.u32 2, %s11
      $region20: #{multi_channel_mlp_prepared.3} parent=15 // pred_fallthru
        _
      // Predicated region
      $region21: #{multi_channel_mlp_prepared.3} parent=15 // pred_check
        %p195 = pneg %p57
      $region22: #{multi_channel_mlp_prepared.3} parent=15 // pred_check_branch
        %197 = sbr.rel (%p195) target = $region24
      $region23: #{multi_channel_mlp_prepared.3} parent=15 // pred_region
        %s198 = smul.u32 2, %s11
        %p199 = scmp.lt.s32.totalorder %s198, 3
        %s200 = scalar_select %p199, %s198, 3
        %s201 = smul.addr %s200, 2
        %s202 = smul.addr %s201, 8
        %s203 = scalar_lea.vmem %s1, %s202
        %s204 = smul.u32 2, %s11
      $region24: #{multi_channel_mlp_prepared.3} parent=15 // pred_fallthru
        _
      // Predicated region
      $region25: #{multi_channel_mlp_prepared.3} parent=15 // pred_check
        %p205 = pneg %p83
      $region26: #{multi_channel_mlp_prepared.3} parent=15 // pred_check_branch
        %207 = sbr.rel (%p205) target = $region28
      $region27: #{multi_channel_mlp_prepared.3} parent=15 // pred_region
        %s208 = smul.u32 2, %s11
        %p209 = scmp.lt.s32.totalorder %s208, 3
        %s210 = scalar_select %p209, %s208, 3
        %s211 = scalar_lea.vmem %s2, %s210
        %s212 = smul.u32 2, %s11
      $region28: #{multi_channel_mlp_prepared.3} parent=15 // pred_fallthru
        _
      // Predicated region
      $region29: #{multi_channel_mlp_prepared.3} parent=15 // pred_check
        %p213 = pneg %p109
      $region30: #{multi_channel_mlp_prepared.3} parent=15 // pred_check_branch
        %215 = sbr.rel (%p213) target = $region32
      $region31: #{multi_channel_mlp_prepared.3} parent=15 // pred_region
        %s216 = smul.u32 2, %s11
        %p217 = scmp.lt.s32.totalorder %s216, 3
        %s218 = scalar_select %p217, %s216, 3
        %s219 = scalar_lea.vmem %s3, %s218
        %s220 = smul.u32 2, %s11
      $region32: #{multi_channel_mlp_prepared.3} parent=15 // pred_fallthru
        _
      // Predicated region
      $region33: #{multi_channel_mlp_prepared.3} parent=15 // pred_check
        %p221 = pneg %p135
      $region34: #{multi_channel_mlp_prepared.3} parent=15 // pred_check_branch
        %223 = sbr.rel (%p221) target = $region36
      $region35: #{multi_channel_mlp_prepared.3} parent=15 // pred_region
        %s224 = smul.u32 2, %s11
        %p225 = scmp.lt.s32.totalorder %s224, 3
        %s226 = scalar_select %p225, %s224, 3
        %s227 = scalar_lea.vmem %s4, %s226
        %s228 = smul.u32 2, %s11
      $region36: #{multi_channel_mlp_prepared.3} parent=15 // pred_fallthru
        _
    $region16: #{multi_channel_mlp_prepared.3} parent=5 // pred_fallthru
      _
    %p229 = scmp.le.s32.totalorder 1, %s11
    %p230 = scmp.lt.s32.totalorder %s11, 3
    %p231 = pnand %p229, %p230
    %p232 = pneg %p231
    // Predicated region
    $region37: #{multi_channel_mlp_prepared.3} parent=5 // pred_check
      _
    $region38: #{multi_channel_mlp_prepared.3} parent=5 // pred_check_branch
      %234 = sbr.rel (%p231) target = $region40
    $region39: #{multi_channel_mlp_prepared.3} parent=5 // pred_region
      %s235 = ssub.s32 %s11, 1
      %s236 = smul.u32 2, %s16
      %p237 = scmp.lt.s32.totalorder %s236, 3
      %s238 = scalar_select %p237, %s236, 3
      %s239 = smul.addr %s238, 2
      %s240 = scalar_lea.vmem %s0, %s239
      %p241 = pneg %p37
      %p242 = pneg %p34
      %s243 = smul.u32 2, %s16
      %p244 = scmp.lt.s32.totalorder %s243, 3
      %s245 = scalar_select %p244, %s243, 3
      %s246 = smul.addr %s245, 2
      %s247 = smul.addr %s246, 8
      %s248 = scalar_lea.vmem %s1, %s247
      %p249 = pneg %p63
      %p250 = pneg %p60
      %s251 = smul.u32 2, %s16
      %p252 = scmp.lt.s32.totalorder %s251, 3
      %s253 = scalar_select %p252, %s251, 3
      %s254 = scalar_lea.vmem %s2, %s253
      %p255 = pneg %p89
      %p256 = pneg %p86
      %s257 = smul.u32 2, %s16
      %p258 = scmp.lt.s32.totalorder %s257, 3
      %s259 = scalar_select %p258, %s257, 3
      %s260 = scalar_lea.vmem %s3, %s259
      %p261 = pneg %p115
      %p262 = pneg %p112
      %s263 = smul.u32 2, %s16
      %p264 = scmp.lt.s32.totalorder %s263, 3
      %s265 = scalar_select %p264, %s263, 3
      %s266 = scalar_lea.vmem %s4, %s265
      %p267 = pneg %p141
      %p268 = pneg %p138
      %p269 = pneg %p167
      %p270 = pneg %p164
      %s271 = smul.u32 2, %s16
      %p272 = scmp.lt.s32.totalorder %s271, 3
      %s273 = scalar_select %p272, %s271, 3
      %s274 = smul.addr %s273, 2
      %s275 = scalar_lea.vmem %s5, %s274
      %s276 = smul.u32 2, %s16
      %p277 = scmp.lt.s32.totalorder %s276, 3
      %s278 = scalar_select %p277, %s276, 3
      %s279 = smul.addr %s278, 2
      %s280 = scalar_lea.vmem %s0, %s279
      %s281 = smul.u32 2, %s16
      %s282 = smul.u32 2, %s16
      %p283 = scmp.lt.s32.totalorder %s282, 3
      %s284 = scalar_select %p283, %s282, 3
      %s285 = smul.addr %s284, 2
      %s286 = smul.addr %s285, 8
      %s287 = scalar_lea.vmem %s1, %s286
      %s288 = smul.u32 2, %s16
      %s289 = smul.u32 2, %s16
      %p290 = scmp.lt.s32.totalorder %s289, 3
      %s291 = scalar_select %p290, %s289, 3
      %s292 = scalar_lea.vmem %s2, %s291
      %s293 = smul.u32 2, %s16
      %s294 = smul.u32 2, %s16
      %p295 = scmp.lt.s32.totalorder %s294, 3
      %s296 = scalar_select %p295, %s294, 3
      %s297 = scalar_lea.vmem %s3, %s296
      %s298 = smul.u32 2, %s16
      %s299 = smul.u32 2, %s16
      %p300 = scmp.lt.s32.totalorder %s299, 3
      %s301 = scalar_select %p300, %s299, 3
      %s302 = scalar_lea.vmem %s4, %s301
      %s303 = smul.u32 2, %s16
      %s304 = smul.u32 2, %s16
      %p305 = scmp.lt.s32.totalorder %s304, 3
      %s306 = scalar_select %p305, %s304, 3
      %s307 = smul.addr %s306, 2
      %s308 = scalar_lea.vmem %s5, %s307
      %s309 = smul.u32 2, %s16
      %v310 = vld [vmem:[%s280] sm:$0x3]
      %v311 = vld [vmem:[%s287] sm:$0xff]
      %v312 = vld [vmem:[%s287 + $0x8] sm:$0xff]
      %v313 = vld [vmem:[%s292] sm:$0x1]
      %v315 = vlaneseq
      %v316 = vshrl.u32 %v315, 7
      %v317 = vsub.s32 0, %v316
      %v318 = vrot.slane %v313, %v317
      %vm320 = vcmask 130048
      %v322 = vsel %vm320, %v310, 0
      %324 = vmatprep.subr.mxu0 0.0
      %325 = vmatpush1.msra.mxu0 %v311
      %326 = vmatprep.subr.mxu0 0.0
      %327 = vmatpush1.msra.mxu0 %v312
      %328 = vmatprep.subr.mxu0 0.0
      %329 = vmatpush1.msra.mxu0 0.0
      %330 = vmatprep.subr.mxu0 0.0
      %331 = vmatpush1.msra.mxu0 0.0
      %332 = vmatprep.subr.mxu0 0.0
      %333 = vmatpush1.msra.mxu0 0.0
      %334 = vmatprep.subr.mxu0 0.0
      %335 = vmatpush1.msra.mxu0 0.0
      %336 = vmatprep.subr.mxu0 0.0
      %337 = vmatpush1.msra.mxu0 0.0
      %338 = vmatprep.subr.mxu0 0.0
      %339 = vmatpush1.msra.mxu0 0.0
      %340 = vmatprep.subr.mxu0 0.0
      %341 = vmatpush1.msra.mxu0 0.0
      %342 = vmatprep.subr.mxu0 0.0
      %343 = vmatpush1.msra.mxu0 0.0
      %344 = vmatprep.subr.mxu0 0.0
      %345 = vmatpush1.msra.mxu0 0.0
      %346 = vmatprep.subr.mxu0 0.0
      %347 = vmatpush1.msra.mxu0 0.0
      %348 = vmatprep.subr.mxu0 0.0
      %349 = vmatpush1.msra.mxu0 0.0
      %350 = vmatprep.subr.mxu0 0.0
      %351 = vmatpush1.msra.mxu0 0.0
      %352 = vmatprep.subr.mxu0 0.0
      %353 = vmatpush1.msra.mxu0 0.0
      %354 = vmatprep.subr.mxu0 0.0
      %355 = vmatpush1.msra.mxu0 0.0
      %356 = vmatprep.subr.mxu0 0.0
      %357 = vmatpush1.msra.mxu0 0.0
      %358 = vmatprep.subr.mxu0 0.0
      %359 = vmatpush1.msra.mxu0 0.0
      %360 = vmatprep.subr.mxu0 0.0
      %361 = vmatpush1.msra.mxu0 0.0
      %362 = vmatprep.subr.mxu0 0.0
      %363 = vmatpush1.msra.mxu0 0.0
      %364 = vmatprep.subr.mxu0 0.0
      %365 = vmatpush1.msra.mxu0 0.0
      %366 = vmatprep.subr.mxu0 0.0
      %367 = vmatpush1.msra.mxu0 0.0
      %368 = vmatprep.subr.mxu0 0.0
      %369 = vmatpush1.msra.mxu0 0.0
      %370 = vmatprep.subr.mxu0 0.0
      %371 = vmatpush1.msra.mxu0 0.0
      %372 = vmatprep.subr.mxu0 0.0
      %373 = vmatpush1.msra.mxu0 0.0
      %374 = vmatprep.subr.mxu0 0.0
      %375 = vmatpush1.msra.mxu0 0.0
      %376 = vmatprep.subr.mxu0 0.0
      %377 = vmatpush1.msra.mxu0 0.0
      %378 = vmatprep.subr.mxu0 0.0
      %379 = vmatpush1.msra.mxu0 0.0
      %380 = vmatprep.subr.mxu0 0.0
      %381 = vmatpush1.msra.mxu0 0.0
      %382 = vmatprep.subr.mxu0 0.0
      %383 = vmatpush1.msra.mxu0 0.0
      %384 = vmatprep.subr.mxu0 0.0
      %385 = vmatpush1.msra.mxu0 0.0
      %386 = vmatprep.subr.mxu0 0.0
      %387 = vmatpush1.msra.mxu0 0.0
      %388 = vmatprep.mubr.f32.mxu0 0.0
      %389 = vmatmul.mubr.f32.gmra.mrb[0].mxu0 %v322
      %v390 = vpop.f32.mrb[0].mxu0
      %v391 = vadd.f32 %v318, %v390
      %v392 = vpop.f32.mrb[0].mxu0
      %393 = vdwg.mxu0
      %vm394 = vcmask 58368
      %v395 = vsel %vm394, %v391, 0.0
      %396 = vadd.xlane.f32.xlu0 %v395
      %v397 = vpop.xlane.xlu0 %396
      %vm398 = vcmask 1041408
      %v399 = vsel %vm398, %v397, 0.0
      %v400 = vrot.slane %v399, 4
      %v401 = vadd.f32 %v399, %v400
      %v402 = vrot.slane %v401, 2
      %v403 = vadd.f32 %v401, %v402
      %v404 = vrot.slane %v403, 1
      %v405 = vadd.f32 %v403, %v404
      %v406 = vmul.f32 %v405, 0.0625
      %v407 = vsub.f32 %v391, %v406
      %v408 = vmul.f32 %v407, %v407
      %v409 = vsel %vm394, %v408, 0.0
      %410 = vadd.xlane.f32.xlu0 %v409
      %v411 = vpop.xlane.xlu0 %410
      %v412 = vsel %vm398, %v411, 0.0
      %v413 = vrot.slane %v412, 4
      %v414 = vadd.f32 %v412, %v413
      %v415 = vrot.slane %v414, 2
      %v416 = vadd.f32 %v414, %v415
      %v417 = vrot.slane %v416, 1
      %v418 = vadd.f32 %v416, %v417
      %v419 = vmul.f32 %v418, 0.0625
      %v420 = vadd.f32 %v419, 1e-05
      %v421 = vrsqrt.pop %v420
      %v422 = vld [vmem:[%s297] sm:$0x1]
      %v423 = vmul.f32 %v407, %v421
      %v425 = vlaneseq
      %v426 = vshrl.u32 %v425, 7
      %v427 = vsub.s32 0, %v426
      %v428 = vrot.slane %v422, %v427
      %429 = vset.pattern.permute.xlu0 0
      %430 = vperm.xlu0 %429, %v428
      %v431 = vpop.permute.xlu0 %430
      %v433 = vmul.f32 %v431, %v423
      %v434 = vld [vmem:[%s302] sm:$0x1]
      %v436 = vlaneseq
      %v437 = vshrl.u32 %v436, 7
      %v438 = vsub.s32 0, %v437
      %v439 = vrot.slane %v434, %v438
      %440 = vset.pattern.permute.xlu0 0
      %441 = vperm.xlu0 %440, %v439
      %v442 = vpop.permute.xlu0 %441
      %v444 = vadd.f32 %v433, %v442
      %445 = vst.msk [vmem:[%s308] sm:$0x3] %vm394, %v444
      %s446 = scalar_lea.vmem %s280, 2
      %v447 = vld [vmem:[%s446] sm:$0x3]
      %s448 = scalar_lea.vmem %s287, 16
      %v449 = vld [vmem:[%s448] sm:$0xff]
      %v450 = vld [vmem:[%s448 + $0x8] sm:$0xff]
      %s451 = scalar_lea.vmem %s292, 1
      %v452 = vld [vmem:[%s451] sm:$0x1]
      %v454 = vlaneseq
      %v455 = vshrl.u32 %v454, 7
      %v456 = vsub.s32 0, %v455
      %v457 = vrot.slane %v452, %v456
      %v460 = vsel %vm320, %v447, 0
      %462 = vmatprep.subr.mxu0 0.0
      %463 = vmatpush1.msra.mxu0 %v449
      %464 = vmatprep.subr.mxu0 0.0
      %465 = vmatpush1.msra.mxu0 %v450
      %466 = vmatprep.subr.mxu0 0.0
      %467 = vmatpush1.msra.mxu0 0.0
      %468 = vmatprep.subr.mxu0 0.0
      %469 = vmatpush1.msra.mxu0 0.0
      %470 = vmatprep.subr.mxu0 0.0
      %471 = vmatpush1.msra.mxu0 0.0
      %472 = vmatprep.subr.mxu0 0.0
      %473 = vmatpush1.msra.mxu0 0.0
      %474 = vmatprep.subr.mxu0 0.0
      %475 = vmatpush1.msra.mxu0 0.0
      %476 = vmatprep.subr.mxu0 0.0
      %477 = vmatpush1.msra.mxu0 0.0
      %478 = vmatprep.subr.mxu0 0.0
      %479 = vmatpush1.msra.mxu0 0.0
      %480 = vmatprep.subr.mxu0 0.0
      %481 = vmatpush1.msra.mxu0 0.0
      %482 = vmatprep.subr.mxu0 0.0
      %483 = vmatpush1.msra.mxu0 0.0
      %484 = vmatprep.subr.mxu0 0.0
      %485 = vmatpush1.msra.mxu0 0.0
      %486 = vmatprep.subr.mxu0 0.0
      %487 = vmatpush1.msra.mxu0 0.0
      %488 = vmatprep.subr.mxu0 0.0
      %489 = vmatpush1.msra.mxu0 0.0
      %490 = vmatprep.subr.mxu0 0.0
      %491 = vmatpush1.msra.mxu0 0.0
      %492 = vmatprep.subr.mxu0 0.0
      %493 = vmatpush1.msra.mxu0 0.0
      %494 = vmatprep.subr.mxu0 0.0
      %495 = vmatpush1.msra.mxu0 0.0
      %496 = vmatprep.subr.mxu0 0.0
      %497 = vmatpush1.msra.mxu0 0.0
      %498 = vmatprep.subr.mxu0 0.0
      %499 = vmatpush1.msra.mxu0 0.0
      %500 = vmatprep.subr.mxu0 0.0
      %501 = vmatpush1.msra.mxu0 0.0
      %502 = vmatprep.subr.mxu0 0.0
      %503 = vmatpush1.msra.mxu0 0.0
      %504 = vmatprep.subr.mxu0 0.0
      %505 = vmatpush1.msra.mxu0 0.0
      %506 = vmatprep.subr.mxu0 0.0
      %507 = vmatpush1.msra.mxu0 0.0
      %508 = vmatprep.subr.mxu0 0.0
      %509 = vmatpush1.msra.mxu0 0.0
      %510 = vmatprep.subr.mxu0 0.0
      %511 = vmatpush1.msra.mxu0 0.0
      %512 = vmatprep.subr.mxu0 0.0
      %513 = vmatpush1.msra.mxu0 0.0
      %514 = vmatprep.subr.mxu0 0.0
      %515 = vmatpush1.msra.mxu0 0.0
      %516 = vmatprep.subr.mxu0 0.0
      %517 = vmatpush1.msra.mxu0 0.0
      %518 = vmatprep.subr.mxu0 0.0
      %519 = vmatpush1.msra.mxu0 0.0
      %520 = vmatprep.subr.mxu0 0.0
      %521 = vmatpush1.msra.mxu0 0.0
      %522 = vmatprep.subr.mxu0 0.0
      %523 = vmatpush1.msra.mxu0 0.0
      %524 = vmatprep.subr.mxu0 0.0
      %525 = vmatpush1.msra.mxu0 0.0
      %526 = vmatprep.mubr.f32.mxu0 0.0
      %527 = vmatmul.mubr.f32.gmra.mrb[0].mxu0 %v460
      %v528 = vpop.f32.mrb[0].mxu0
      %v529 = vadd.f32 %v457, %v528
      %v530 = vpop.f32.mrb[0].mxu0
      %531 = vdwg.mxu0
      %v532 = vsel %vm394, %v529, 0.0
      %533 = vadd.xlane.f32.xlu0 %v532
      %v534 = vpop.xlane.xlu0 %533
      %v535 = vsel %vm398, %v534, 0.0
      %v536 = vrot.slane %v535, 4
      %v537 = vadd.f32 %v535, %v536
      %v538 = vrot.slane %v537, 2
      %v539 = vadd.f32 %v537, %v538
      %v540 = vrot.slane %v539, 1
      %v541 = vadd.f32 %v539, %v540
      %v542 = vmul.f32 %v541, 0.0625
      %v543 = vsub.f32 %v529, %v542
      %v544 = vmul.f32 %v543, %v543
      %v545 = vsel %vm394, %v544, 0.0
      %546 = vadd.xlane.f32.xlu0 %v545
      %v547 = vpop.xlane.xlu0 %546
      %v548 = vsel %vm398, %v547, 0.0
      %v549 = vrot.slane %v548, 4
      %v550 = vadd.f32 %v548, %v549
      %v551 = vrot.slane %v550, 2
      %v552 = vadd.f32 %v550, %v551
      %v553 = vrot.slane %v552, 1
      %v554 = vadd.f32 %v552, %v553
      %v555 = vmul.f32 %v554, 0.0625
      %v556 = vadd.f32 %v555, 1e-05
      %v557 = vrsqrt.pop %v556
      %s558 = scalar_lea.vmem %s297, 1
      %v559 = vld [vmem:[%s558] sm:$0x1]
      %v560 = vmul.f32 %v543, %v557
      %v562 = vlaneseq
      %v563 = vshrl.u32 %v562, 7
      %v564 = vsub.s32 0, %v563
      %v565 = vrot.slane %v559, %v564
      %566 = vset.pattern.permute.xlu0 0
      %567 = vperm.xlu0 %566, %v565
      %v568 = vpop.permute.xlu0 %567
      %v570 = vmul.f32 %v568, %v560
      %s571 = scalar_lea.vmem %s302, 1
      %v572 = vld [vmem:[%s571] sm:$0x1]
      %v574 = vlaneseq
      %v575 = vshrl.u32 %v574, 7
      %v576 = vsub.s32 0, %v575
      %v577 = vrot.slane %v572, %v576
      %578 = vset.pattern.permute.xlu0 0
      %579 = vperm.xlu0 %578, %v577
      %v580 = vpop.permute.xlu0 %579
      %v582 = vadd.f32 %v570, %v580
      %s583 = scalar_lea.vmem %s308, 2
      %584 = vst.msk [vmem:[%s583] sm:$0x3] %vm394, %v582
      %s585 = smul.u32 2, %s16
      %p586 = scmp.lt.s32.totalorder %s585, 3
      %s587 = scalar_select %p586, %s585, 3
      %s588 = smul.addr %s587, 2
      %s589 = scalar_lea.vmem %s5, %s588
      // Predicated region
      $region41: #{multi_channel_mlp_prepared.3} parent=39 // pred_check
        %p590 = pneg %p164
      $region42: #{multi_channel_mlp_prepared.3} parent=39 // pred_check_branch
        %592 = sbr.rel (%p590) target = $region44
      $region43: #{multi_channel_mlp_prepared.3} parent=39 // pred_region
        %s593 = smul.u32 2, %s16
      $region44: #{multi_channel_mlp_prepared.3} parent=39 // pred_fallthru
        _
    $region40: #{multi_channel_mlp_prepared.3} parent=5 // pred_fallthru
      _
    %p594 = scmp.le.s32.totalorder 2, %s11
    // Predicated region
    $region45: #{multi_channel_mlp_prepared.3} parent=5 // pred_check
      %p595 = pneg %p594
    $region46: #{multi_channel_mlp_prepared.3} parent=5 // pred_check_branch
      %597 = sbr.rel (%p595) target = $region48
    $region47: #{multi_channel_mlp_prepared.3} parent=5 // pred_region
      %s598 = ssub.s32 %s11, 2
      // Predicated region
      $region49: #{multi_channel_mlp_prepared.3} parent=47 // pred_check
        %p599 = pneg %p170
      $region50: #{multi_channel_mlp_prepared.3} parent=47 // pred_check_branch
        %601 = sbr.rel (%p599) target = $region52
      $region51: #{multi_channel_mlp_prepared.3} parent=47 // pred_region
        %s602 = smul.u32 2, %s17
        %p603 = scmp.lt.s32.totalorder %s602, 3
        %s604 = scalar_select %p603, %s602, 3
        %s605 = smul.addr %s604, 2
        %s606 = scalar_lea.vmem %s5, %s605
      $region52: #{multi_channel_mlp_prepared.3} parent=47 // pred_fallthru
        _
    $region48: #{multi_channel_mlp_prepared.3} parent=5 // pred_fallthru
      _
  $region6: #{multi_channel_mlp_prepared.3} parent=0 // loop_footer
    %s15 = sadd.s32 1, %s11
  $region7: #{multi_channel_mlp_prepared.3} parent=0 // loop_footer_branch
    %10 = sbr.rel target = $region3
  $region8: #{multi_channel_mlp_prepared.3} parent=0 // loop_exit
    _

// kernel: multi_channel_mlp_prepared.2
$region0: #{multi_channel_mlp_prepared.2}
  #allocation0 [shape = 'u32[]', space=smem, size = 0x4, offset = 0x4, fixed_abs, tag = 'smem constant byte address 0x4 - core index']
  #allocation1 [shape = 'u32[144,128]{1,0:T(1,128)}', space=vmem, size = 0x12000, scoped, tag = 'internal scratch']
  #allocation2 [shape = 'f32[8,8]{1,0:T(8,128)}', space=vmem, size = 0x1000, scoped, tag = 'scratch operand']
  %s0 = inlined_call_operand.vmem [shape: f32[2,8,16], index: 0, kind: input, shape index: {}]
  %s1 = inlined_call_operand.vmem [shape: f32[4,16,8], index: 1, kind: input, shape index: {}]
  %s2 = inlined_call_operand.vmem [shape: f32[8,8], index: 2, kind: input, shape index: {}]
  %s3 = inlined_call_operand.vmem [shape: f32[5,8,8], index: 3, kind: input, shape index: {}]
  %s4 = inlined_call_operand.vmem [shape: f32[5,8,1], index: 4, kind: input, shape index: {}]
  %s5 = inlined_call_operand.vmem [shape: f32[4,2,2,8], index: 5, kind: output, shape index: {}]
  %s6 = sld [smem:[#allocation0]]
  $region90: #{multi_channel_mlp_prepared.2} parent=0
    _
  %s8 = ssub.s32 1, %s6
  %s9 = scalar_select 0, %s8, %s6
  $region1: #{multi_channel_mlp_prepared.2} parent=0
    #allocation3 [shape = 'u8[8192]{0}', space=vmem, size = 0x2000, scoped, tag = 'output window, operand 0']
    loop: start=0, step=1, limit=4
    $region2: #{multi_channel_mlp_prepared.2} parent=1 // loop_pre_header
      _
    $region3: #{multi_channel_mlp_prepared.2} parent=1 // loop_header
      %s11 = sphi 0, %s15
      %p12 = scmp.ge.s32.totalorder %s11, 4
      %s21 = sphi 0, %s23
      %s24 = sphi 0, %s21
      %s25 = sphi 0, %s24
      %s41 = sphi 0, %s25
      %s45 = sphi 0, %s45
      %s47 = sphi 0, %s45
      %s48 = sphi 0, %s47
      %s62 = sphi 0, %s48
      %s66 = sphi 0, %s66
      %s68 = sphi 0, %s66
      %s69 = sphi 0, %s68
      %s83 = sphi 0, %s69
      %s87 = sphi 0, %s87
      %s89 = sphi 0, %s87
      %s90 = sphi 0, %s89
      %s104 = sphi 0, %s90
      %s108 = sphi 0, %s108
      %s110 = sphi 0, %s108
      %s111 = sphi 0, %s110
      %s125 = sphi 0, %s111
      %s131 = sphi 0, %s133
      %s134 = sphi 0, %s131
      %s135 = sphi 0, %s134
      %s151 = sphi 0, %s135
    $region4: #{multi_channel_mlp_prepared.2} parent=1 // loop_header_branch
      %14 = sbr.rel (%p12) target = $region8
    $region5: #{multi_channel_mlp_prepared.2} parent=1 // loop_body
      %s16 = ssub.s32 %s11, 1
      %s17 = ssub.s32 %s11, 2
      %s18 = sadd.s32 %s11, 1
      %s19 = ssub.s32 %s11, %s18
      %p20 = scmp.eq.s32.totalorder %s19, 0
      %s22 = sadd.s32 %s21, 1
      %s23 = scalar_select %p20, %s21, %s22
      %p26 = pneg %p20
      %p27 = scmp.eq.s32.totalorder %s11, 1
      %p28 = por %p26, %p27
      %p29 = scmp.ne.s32.totalorder %s21, %s24
      %p30 = scmp.eq.s32.totalorder %s11, 0
      %p31 = por %p29, %p30
      %p32 = scmp.ne.s32.totalorder %s21, %s24
      %p33 = scmp.eq.s32.totalorder %s16, 1
      %p34 = por %p32, %p33
      %p35 = scmp.ne.s32.totalorder %s24, %s25
      %p36 = scmp.eq.s32.totalorder %s16, 0
      %p37 = por %p35, %p36
      %p38 = scmp.ne.s32.totalorder %s24, %s25
      %p39 = scmp.eq.s32.totalorder %s17, 1
      %p40 = por %p38, %p39
      %p42 = scmp.ne.s32.totalorder %s25, %s41
      %p43 = scmp.eq.s32.totalorder %s17, 0
      %p44 = por %p42, %p43
      %s46 = sadd.s32 %s45, 1
      %p49 = scmp.eq.s32.totalorder %s11, 1
      %p50 = scmp.ne.s32.totalorder %s45, %s47
      %p51 = scmp.eq.s32.totalorder %s11, 0
      %p52 = por %p50, %p51
      %p53 = scmp.ne.s32.totalorder %s45, %s47
      %p54 = scmp.eq.s32.totalorder %s16, 1
      %p55 = por %p53, %p54
      %p56 = scmp.ne.s32.totalorder %s47, %s48
      %p57 = scmp.eq.s32.totalorder %s16, 0
      %p58 = por %p56, %p57
      %p59 = scmp.ne.s32.totalorder %s47, %s48
      %p60 = scmp.eq.s32.totalorder %s17, 1
      %p61 = por %p59, %p60
      %p63 = scmp.ne.s32.totalorder %s48, %s62
      %p64 = scmp.eq.s32.totalorder %s17, 0
      %p65 = por %p63, %p64
      %s67 = sadd.s32 %s66, 1
      %p70 = scmp.eq.s32.totalorder %s11, 1
      %p71 = scmp.ne.s32.totalorder %s66, %s68
      %p72 = scmp.eq.s32.totalorder %s11, 0
      %p73 = por %p71, %p72
      %p74 = scmp.ne.s32.totalorder %s66, %s68
      %p75 = scmp.eq.s32.totalorder %s16, 1
      %p76 = por %p74, %p75
      %p77 = scmp.ne.s32.totalorder %s68, %s69
      %p78 = scmp.eq.s32.totalorder %s16, 0
      %p79 = por %p77, %p78
      %p80 = scmp.ne.s32.totalorder %s68, %s69
      %p81 = scmp.eq.s32.totalorder %s17, 1
      %p82 = por %p80, %p81
      %p84 = scmp.ne.s32.totalorder %s69, %s83
      %p85 = scmp.eq.s32.totalorder %s17, 0
      %p86 = por %p84, %p85
      %s88 = sadd.s32 %s87, 1
      %p91 = scmp.eq.s32.totalorder %s11, 1
      %p92 = scmp.ne.s32.totalorder %s87, %s89
      %p93 = scmp.eq.s32.totalorder %s11, 0
      %p94 = por %p92, %p93
      %p95 = scmp.ne.s32.totalorder %s87, %s89
      %p96 = scmp.eq.s32.totalorder %s16, 1
      %p97 = por %p95, %p96
      %p98 = scmp.ne.s32.totalorder %s89, %s90
      %p99 = scmp.eq.s32.totalorder %s16, 0
      %p100 = por %p98, %p99
      %p101 = scmp.ne.s32.totalorder %s89, %s90
      %p102 = scmp.eq.s32.totalorder %s17, 1
      %p103 = por %p101, %p102
      %p105 = scmp.ne.s32.totalorder %s90, %s104
      %p106 = scmp.eq.s32.totalorder %s17, 0
      %p107 = por %p105, %p106
      %s109 = sadd.s32 %s108, 1
      %p112 = scmp.eq.s32.totalorder %s11, 1
      %p113 = scmp.ne.s32.totalorder %s108, %s110
      %p114 = scmp.eq.s32.totalorder %s11, 0
      %p115 = por %p113, %p114
      %p116 = scmp.ne.s32.totalorder %s108, %s110
      %p117 = scmp.eq.s32.totalorder %s16, 1
      %p118 = por %p116, %p117
      %p119 = scmp.ne.s32.totalorder %s110, %s111
      %p120 = scmp.eq.s32.totalorder %s16, 0
      %p121 = por %p119, %p120
      %p122 = scmp.ne.s32.totalorder %s110, %s111
      %p123 = scmp.eq.s32.totalorder %s17, 1
      %p124 = por %p122, %p123
      %p126 = scmp.ne.s32.totalorder %s111, %s125
      %p127 = scmp.eq.s32.totalorder %s17, 0
      %p128 = por %p126, %p127
      %s129 = ssub.s32 %s11, %s18
      %p130 = scmp.eq.s32.totalorder %s129, 0
      %s132 = sadd.s32 %s131, 1
      %s133 = scalar_select %p130, %s131, %s132
      %p136 = pneg %p130
      %p137 = scmp.eq.s32.totalorder %s11, 1
      %p138 = por %p136, %p137
      %p139 = scmp.ne.s32.totalorder %s131, %s134
      %p140 = scmp.eq.s32.totalorder %s11, 0
      %p141 = por %p139, %p140
      %p142 = scmp.ne.s32.totalorder %s131, %s134
      %p143 = scmp.eq.s32.totalorder %s16, 1
      %p144 = por %p142, %p143
      %p145 = scmp.ne.s32.totalorder %s134, %s135
      %p146 = scmp.eq.s32.totalorder %s16, 0
      %p147 = por %p145, %p146
      %p148 = scmp.ne.s32.totalorder %s134, %s135
      %p149 = scmp.eq.s32.totalorder %s17, 1
      %p150 = por %p148, %p149
      %p152 = scmp.ne.s32.totalorder %s135, %s151
      %p153 = scmp.eq.s32.totalorder %s17, 0
      %p154 = por %p152, %p153
      %p155 = scmp.le.s32.totalorder 1, %s11
      %p156 = scmp.lt.s32.totalorder %s11, 3
      %p157 = pnand %p155, %p156
      %p158 = pneg %p157
      // Predicated region
      $region9: #{multi_channel_mlp_prepared.2} parent=5 // pred_check
        _
      $region10: #{multi_channel_mlp_prepared.2} parent=5 // pred_check_branch
        %160 = sbr.rel (%p157) target = $region12
      $region11: #{multi_channel_mlp_prepared.2} parent=5 // pred_region
        %s161 = ssub.s32 %s11, 1
        // Predicated region
        $region13: #{multi_channel_mlp_prepared.2} parent=11 // pred_check
          %p162 = pneg %p58
        $region14: #{multi_channel_mlp_prepared.2} parent=11 // pred_check_branch
          %164 = sbr.rel (%p162) target = $region16
        $region15: #{multi_channel_mlp_prepared.2} parent=11 // pred_region
          _
        $region16: #{multi_channel_mlp_prepared.2} parent=11 // pred_fallthru
          _
        // Predicated region
        $region17: #{multi_channel_mlp_prepared.2} parent=11 // pred_check
          %p165 = pneg %p79
        $region18: #{multi_channel_mlp_prepared.2} parent=11 // pred_check_branch
          %167 = sbr.rel (%p165) target = $region20
        $region19: #{multi_channel_mlp_prepared.2} parent=11 // pred_region
          _
        $region20: #{multi_channel_mlp_prepared.2} parent=11 // pred_fallthru
          _
        // Predicated region
        $region21: #{multi_channel_mlp_prepared.2} parent=11 // pred_check
          %p168 = pneg %p100
        $region22: #{multi_channel_mlp_prepared.2} parent=11 // pred_check_branch
          %170 = sbr.rel (%p168) target = $region24
        $region23: #{multi_channel_mlp_prepared.2} parent=11 // pred_region
          _
        $region24: #{multi_channel_mlp_prepared.2} parent=11 // pred_fallthru
          _
        // Predicated region
        $region25: #{multi_channel_mlp_prepared.2} parent=11 // pred_check
          %p171 = pneg %p121
        $region26: #{multi_channel_mlp_prepared.2} parent=11 // pred_check_branch
          %173 = sbr.rel (%p171) target = $region28
        $region27: #{multi_channel_mlp_prepared.2} parent=11 // pred_region
          _
        $region28: #{multi_channel_mlp_prepared.2} parent=11 // pred_fallthru
          _
      $region12: #{multi_channel_mlp_prepared.2} parent=5 // pred_fallthru
        _
      %p174 = scmp.lt.s32.totalorder %s11, 2
      // Predicated region
      $region29: #{multi_channel_mlp_prepared.2} parent=5 // pred_check
        %p175 = pneg %p174
      $region30: #{multi_channel_mlp_prepared.2} parent=5 // pred_check_branch
        %177 = sbr.rel (%p175) target = $region32
      $region31: #{multi_channel_mlp_prepared.2} parent=5 // pred_region
        // Predicated region
        $region33: #{multi_channel_mlp_prepared.2} parent=31 // pred_check
          %p178 = pneg %p31
        $region34: #{multi_channel_mlp_prepared.2} parent=31 // pred_check_branch
          %180 = sbr.rel (%p178) target = $region36
        $region35: #{multi_channel_mlp_prepared.2} parent=31 // pred_region
          %p181 = scmp.lt.s32.totalorder %s11, 1
          %s182 = scalar_select %p181, %s11, 1
          %s183 = smul.addr %s182, 8
          %s184 = scalar_lea.vmem %s0, %s183
        $region36: #{multi_channel_mlp_prepared.2} parent=31 // pred_fallthru
          _
      $region32: #{multi_channel_mlp_prepared.2} parent=5 // pred_fallthru
        _
      %p185 = scmp.le.s32.totalorder 1, %s11
      %p186 = scmp.lt.s32.totalorder %s11, 3
      %p187 = pnand %p185, %p186
      %p188 = pneg %p187
      // Predicated region
      $region37: #{multi_channel_mlp_prepared.2} parent=5 // pred_check
        _
      $region38: #{multi_channel_mlp_prepared.2} parent=5 // pred_check_branch
        %190 = sbr.rel (%p187) target = $region40
      $region39: #{multi_channel_mlp_prepared.2} parent=5 // pred_region
        %s191 = ssub.s32 %s11, 1
        %p192 = scmp.lt.s32.totalorder %s16, 1
        %s193 = scalar_select %p192, %s16, 1
        %s194 = smul.addr %s193, 8
        %s195 = scalar_lea.vmem %s0, %s194
        %p196 = pneg %p37
        %p197 = pneg %p34
        %p198 = pneg %p58
        %p199 = pneg %p55
        %p200 = pneg %p79
        %p201 = pneg %p76
        %p202 = pneg %p100
        %p203 = pneg %p97
        %p204 = pneg %p121
        %p205 = pneg %p118
        %p206 = pneg %p147
        %p207 = pneg %p144
        %s208 = sand.u32 %s134, 1
        %s209 = sand.u32 %s134, 1
        %s210 = smul.addr %s209, 8
        %s211 = scalar_lea.vmem [#allocation3], %s210
        %p212 = scmp.lt.s32.totalorder %s16, 1
        %s213 = scalar_select %p212, %s16, 1
        %s214 = smul.addr %s213, 8
        %s215 = scalar_lea.vmem %s0, %s214
        %v216 = vld [vmem:[%s215] sm:$0xff]
        %v217 = vld [vmem:[%s1] sm:$0xff]
        %v218 = vld [vmem:[%s1 + $0x8] sm:$0xff]
        %v219 = vld [vmem:[%s2] sm:$0x3]
        %vm220 = vcmask 130048
        %v222 = vsel %vm220, %v216, 0
        %224 = vmatprep.subr.mxu0 0.0
        %225 = vmatpush1.msra.mxu0 %v217
        %226 = vmatprep.subr.mxu0 0.0
        %227 = vmatpush1.msra.mxu0 %v218
        %228 = vmatprep.subr.mxu0 0.0
        %229 = vmatpush1.msra.mxu0 0.0
        %230 = vmatprep.subr.mxu0 0.0
        %231 = vmatpush1.msra.mxu0 0.0
        %232 = vmatprep.subr.mxu0 0.0
        %233 = vmatpush1.msra.mxu0 0.0
        %234 = vmatprep.subr.mxu0 0.0
        %235 = vmatpush1.msra.mxu0 0.0
        %236 = vmatprep.subr.mxu0 0.0
        %237 = vmatpush1.msra.mxu0 0.0
        %238 = vmatprep.subr.mxu0 0.0
        %239 = vmatpush1.msra.mxu0 0.0
        %240 = vmatprep.subr.mxu0 0.0
        %241 = vmatpush1.msra.mxu0 0.0
        %242 = vmatprep.subr.mxu0 0.0
        %243 = vmatpush1.msra.mxu0 0.0
        %244 = vmatprep.subr.mxu0 0.0
        %245 = vmatpush1.msra.mxu0 0.0
        %246 = vmatprep.subr.mxu0 0.0
        %247 = vmatpush1.msra.mxu0 0.0
        %248 = vmatprep.subr.mxu0 0.0
        %249 = vmatpush1.msra.mxu0 0.0
        %250 = vmatprep.subr.mxu0 0.0
        %251 = vmatpush1.msra.mxu0 0.0
        %252 = vmatprep.subr.mxu0 0.0
        %253 = vmatpush1.msra.mxu0 0.0
        %254 = vmatprep.subr.mxu0 0.0
        %255 = vmatpush1.msra.mxu0 0.0
        %256 = vmatprep.subr.mxu0 0.0
        %257 = vmatpush1.msra.mxu0 0.0
        %258 = vmatprep.subr.mxu0 0.0
        %259 = vmatpush1.msra.mxu0 0.0
        %260 = vmatprep.subr.mxu0 0.0
        %261 = vmatpush1.msra.mxu0 0.0
        %262 = vmatprep.subr.mxu0 0.0
        %263 = vmatpush1.msra.mxu0 0.0
        %264 = vmatprep.subr.mxu0 0.0
        %265 = vmatpush1.msra.mxu0 0.0
        %266 = vmatprep.subr.mxu0 0.0
        %267 = vmatpush1.msra.mxu0 0.0
        %268 = vmatprep.subr.mxu0 0.0
        %269 = vmatpush1.msra.mxu0 0.0
        %270 = vmatprep.subr.mxu0 0.0
        %271 = vmatpush1.msra.mxu0 0.0
        %272 = vmatprep.subr.mxu0 0.0
        %273 = vmatpush1.msra.mxu0 0.0
        %274 = vmatprep.subr.mxu0 0.0
        %275 = vmatpush1.msra.mxu0 0.0
        %276 = vmatprep.subr.mxu0 0.0
        %277 = vmatpush1.msra.mxu0 0.0
        %278 = vmatprep.subr.mxu0 0.0
        %279 = vmatpush1.msra.mxu0 0.0
        %280 = vmatprep.subr.mxu0 0.0
        %281 = vmatpush1.msra.mxu0 0.0
        %282 = vmatprep.subr.mxu0 0.0
        %283 = vmatpush1.msra.mxu0 0.0
        %284 = vmatprep.subr.mxu0 0.0
        %285 = vmatpush1.msra.mxu0 0.0
        %286 = vmatprep.subr.mxu0 0.0
        %287 = vmatpush1.msra.mxu0 0.0
        %288 = vmatprep.mubr.f32.mxu0 0.0
        %289 = vmatmul.mubr.f32.gmra.mrb[0].mxu0 %v222
        %v290 = vpop.f32.mrb[0].mxu0
        %v291 = vadd.f32 %v219, %v290
        %v292 = vpop.f32.mrb[0].mxu0
        %293 = vdwg.mxu0
        %vm294 = vcmask 58368
        %295 = vst.msk [vmem:[#allocation2] sm:$0x3] %vm294, %v291
        %s296 = scalar_lea.vmem %s1, 16
        %v297 = vld [vmem:[%s296] sm:$0xff]
        %v298 = vld [vmem:[%s296 + $0x8] sm:$0xff]
        %v299 = vld [vmem:[%s2 + $0x2] sm:$0x3]
        %v300 = vrot.slane %v216, 2
        %v301 = vsel %vm220, %v300, 0
        %303 = vmatprep.subr.mxu0 0.0
        %304 = vmatpush1.msra.mxu0 %v297
        %305 = vmatprep.subr.mxu0 0.0
        %306 = vmatpush1.msra.mxu0 %v298
        %307 = vmatprep.subr.mxu0 0.0
        %308 = vmatpush1.msra.mxu0 0.0
        %309 = vmatprep.subr.mxu0 0.0
        %310 = vmatpush1.msra.mxu0 0.0
        %311 = vmatprep.subr.mxu0 0.0
        %312 = vmatpush1.msra.mxu0 0.0
        %313 = vmatprep.subr.mxu0 0.0
        %314 = vmatpush1.msra.mxu0 0.0
        %315 = vmatprep.subr.mxu0 0.0
        %316 = vmatpush1.msra.mxu0 0.0
        %317 = vmatprep.subr.mxu0 0.0
        %318 = vmatpush1.msra.mxu0 0.0
        %319 = vmatprep.subr.mxu0 0.0
        %320 = vmatpush1.msra.mxu0 0.0
        %321 = vmatprep.subr.mxu0 0.0
        %322 = vmatpush1.msra.mxu0 0.0
        %323 = vmatprep.subr.mxu0 0.0
        %324 = vmatpush1.msra.mxu0 0.0
        %325 = vmatprep.subr.mxu0 0.0
        %326 = vmatpush1.msra.mxu0 0.0
        %327 = vmatprep.subr.mxu0 0.0
        %328 = vmatpush1.msra.mxu0 0.0
        %329 = vmatprep.subr.mxu0 0.0
        %330 = vmatpush1.msra.mxu0 0.0
        %331 = vmatprep.subr.mxu0 0.0
        %332 = vmatpush1.msra.mxu0 0.0
        %333 = vmatprep.subr.mxu0 0.0
        %334 = vmatpush1.msra.mxu0 0.0
        %335 = vmatprep.subr.mxu0 0.0
        %336 = vmatpush1.msra.mxu0 0.0
        %337 = vmatprep.subr.mxu0 0.0
        %338 = vmatpush1.msra.mxu0 0.0
        %339 = vmatprep.subr.mxu0 0.0
        %340 = vmatpush1.msra.mxu0 0.0
        %341 = vmatprep.subr.mxu0 0.0
        %342 = vmatpush1.msra.mxu0 0.0
        %343 = vmatprep.subr.mxu0 0.0
        %344 = vmatpush1.msra.mxu0 0.0
        %345 = vmatprep.subr.mxu0 0.0
        %346 = vmatpush1.msra.mxu0 0.0
        %347 = vmatprep.subr.mxu0 0.0
        %348 = vmatpush1.msra.mxu0 0.0
        %349 = vmatprep.subr.mxu0 0.0
        %350 = vmatpush1.msra.mxu0 0.0
        %351 = vmatprep.subr.mxu0 0.0
        %352 = vmatpush1.msra.mxu0 0.0
        %353 = vmatprep.subr.mxu0 0.0
        %354 = vmatpush1.msra.mxu0 0.0
        %355 = vmatprep.subr.mxu0 0.0
        %356 = vmatpush1.msra.mxu0 0.0
        %357 = vmatprep.subr.mxu0 0.0
        %358 = vmatpush1.msra.mxu0 0.0
        %359 = vmatprep.subr.mxu0 0.0
        %360 = vmatpush1.msra.mxu0 0.0
        %361 = vmatprep.subr.mxu0 0.0
        %362 = vmatpush1.msra.mxu0 0.0
        %363 = vmatprep.subr.mxu0 0.0
        %364 = vmatpush1.msra.mxu0 0.0
        %365 = vmatprep.subr.mxu0 0.0
        %366 = vmatpush1.msra.mxu0 0.0
        %367 = vmatprep.mubr.f32.mxu0 0.0
        %368 = vmatmul.mubr.f32.gmra.mrb[0].mxu0 %v301
        %v369 = vpop.f32.mrb[0].mxu0
        %v370 = vadd.f32 %v299, %v369
        %v371 = vpop.f32.mrb[0].mxu0
        %372 = vdwg.mxu0
        %373 = vst.msk [vmem:[#allocation2 + $0x2] sm:$0x3] %vm294, %v370
        %s374 = scalar_lea.vmem %s1, 32
        %v375 = vld [vmem:[%s374] sm:$0xff]
        %v376 = vld [vmem:[%s374 + $0x8] sm:$0xff]
        %v377 = vld [vmem:[%s2 + $0x4] sm:$0x3]
        %v378 = vrot.slane %v216, 4
        %v379 = vsel %vm220, %v378, 0
        %381 = vmatprep.subr.mxu0 0.0
        %382 = vmatpush1.msra.mxu0 %v375
        %383 = vmatprep.subr.mxu0 0.0
        %384 = vmatpush1.msra.mxu0 %v376
        %385 = vmatprep.subr.mxu0 0.0
        %386 = vmatpush1.msra.mxu0 0.0
        %387 = vmatprep.subr.mxu0 0.0
        %388 = vmatpush1.msra.mxu0 0.0
        %389 = vmatprep.subr.mxu0 0.0
        %390 = vmatpush1.msra.mxu0 0.0
        %391 = vmatprep.subr.mxu0 0.0
        %392 = vmatpush1.msra.mxu0 0.0
        %393 = vmatprep.subr.mxu0 0.0
        %394 = vmatpush1.msra.mxu0 0.0
        %395 = vmatprep.subr.mxu0 0.0
        %396 = vmatpush1.msra.mxu0 0.0
        %397 = vmatprep.subr.mxu0 0.0
        %398 = vmatpush1.msra.mxu0 0.0
        %399 = vmatprep.subr.mxu0 0.0
        %400 = vmatpush1.msra.mxu0 0.0
        %401 = vmatprep.subr.mxu0 0.0
        %402 = vmatpush1.msra.mxu0 0.0
        %403 = vmatprep.subr.mxu0 0.0
        %404 = vmatpush1.msra.mxu0 0.0
        %405 = vmatprep.subr.mxu0 0.0
        %406 = vmatpush1.msra.mxu0 0.0
        %407 = vmatprep.subr.mxu0 0.0
        %408 = vmatpush1.msra.mxu0 0.0
        %409 = vmatprep.subr.mxu0 0.0
        %410 = vmatpush1.msra.mxu0 0.0
        %411 = vmatprep.subr.mxu0 0.0
        %412 = vmatpush1.msra.mxu0 0.0
        %413 = vmatprep.subr.mxu0 0.0
        %414 = vmatpush1.msra.mxu0 0.0
        %415 = vmatprep.subr.mxu0 0.0
        %416 = vmatpush1.msra.mxu0 0.0
        %417 = vmatprep.subr.mxu0 0.0
        %418 = vmatpush1.msra.mxu0 0.0
        %419 = vmatprep.subr.mxu0 0.0
        %420 = vmatpush1.msra.mxu0 0.0
        %421 = vmatprep.subr.mxu0 0.0
        %422 = vmatpush1.msra.mxu0 0.0
        %423 = vmatprep.subr.mxu0 0.0
        %424 = vmatpush1.msra.mxu0 0.0
        %425 = vmatprep.subr.mxu0 0.0
        %426 = vmatpush1.msra.mxu0 0.0
        %427 = vmatprep.subr.mxu0 0.0
        %428 = vmatpush1.msra.mxu0 0.0
        %429 = vmatprep.subr.mxu0 0.0
        %430 = vmatpush1.msra.mxu0 0.0
        %431 = vmatprep.subr.mxu0 0.0
        %432 = vmatpush1.msra.mxu0 0.0
        %433 = vmatprep.subr.mxu0 0.0
        %434 = vmatpush1.msra.mxu0 0.0
        %435 = vmatprep.subr.mxu0 0.0
        %436 = vmatpush1.msra.mxu0 0.0
        %437 = vmatprep.subr.mxu0 0.0
        %438 = vmatpush1.msra.mxu0 0.0
        %439 = vmatprep.subr.mxu0 0.0
        %440 = vmatpush1.msra.mxu0 0.0
        %441 = vmatprep.subr.mxu0 0.0
        %442 = vmatpush1.msra.mxu0 0.0
        %443 = vmatprep.subr.mxu0 0.0
        %444 = vmatpush1.msra.mxu0 0.0
        %445 = vmatprep.mubr.f32.mxu0 0.0
        %446 = vmatmul.mubr.f32.gmra.mrb[0].mxu0 %v379
        %v447 = vpop.f32.mrb[0].mxu0
        %v448 = vadd.f32 %v377, %v447
        %v449 = vpop.f32.mrb[0].mxu0
        %450 = vdwg.mxu0
        %451 = vst.msk [vmem:[#allocation2 + $0x4] sm:$0x3] %vm294, %v448
        %s452 = scalar_lea.vmem %s1, 48
        %v453 = vld [vmem:[%s452] sm:$0xff]
        %v454 = vld [vmem:[%s452 + $0x8] sm:$0xff]
        %v455 = vld [vmem:[%s2 + $0x6] sm:$0x3]
        %v456 = vrot.slane %v216, 6
        %v457 = vsel %vm220, %v456, 0
        %459 = vmatprep.subr.mxu0 0.0
        %460 = vmatpush1.msra.mxu0 %v453
        %461 = vmatprep.subr.mxu0 0.0
        %462 = vmatpush1.msra.mxu0 %v454
        %463 = vmatprep.subr.mxu0 0.0
        %464 = vmatpush1.msra.mxu0 0.0
        %465 = vmatprep.subr.mxu0 0.0
        %466 = vmatpush1.msra.mxu0 0.0
        %467 = vmatprep.subr.mxu0 0.0
        %468 = vmatpush1.msra.mxu0 0.0
        %469 = vmatprep.subr.mxu0 0.0
        %470 = vmatpush1.msra.mxu0 0.0
        %471 = vmatprep.subr.mxu0 0.0
        %472 = vmatpush1.msra.mxu0 0.0
        %473 = vmatprep.subr.mxu0 0.0
        %474 = vmatpush1.msra.mxu0 0.0
        %475 = vmatprep.subr.mxu0 0.0
        %476 = vmatpush1.msra.mxu0 0.0
        %477 = vmatprep.subr.mxu0 0.0
        %478 = vmatpush1.msra.mxu0 0.0
        %479 = vmatprep.subr.mxu0 0.0
        %480 = vmatpush1.msra.mxu0 0.0
        %481 = vmatprep.subr.mxu0 0.0
        %482 = vmatpush1.msra.mxu0 0.0
        %483 = vmatprep.subr.mxu0 0.0
        %484 = vmatpush1.msra.mxu0 0.0
        %485 = vmatprep.subr.mxu0 0.0
        %486 = vmatpush1.msra.mxu0 0.0
        %487 = vmatprep.subr.mxu0 0.0
        %488 = vmatpush1.msra.mxu0 0.0
        %489 = vmatprep.subr.mxu0 0.0
        %490 = vmatpush1.msra.mxu0 0.0
        %491 = vmatprep.subr.mxu0 0.0
        %492 = vmatpush1.msra.mxu0 0.0
        %493 = vmatprep.subr.mxu0 0.0
        %494 = vmatpush1.msra.mxu0 0.0
        %495 = vmatprep.subr.mxu0 0.0
        %496 = vmatpush1.msra.mxu0 0.0
        %497 = vmatprep.subr.mxu0 0.0
        %498 = vmatpush1.msra.mxu0 0.0
        %499 = vmatprep.subr.mxu0 0.0
        %500 = vmatpush1.msra.mxu0 0.0
        %501 = vmatprep.subr.mxu0 0.0
        %502 = vmatpush1.msra.mxu0 0.0
        %503 = vmatprep.subr.mxu0 0.0
        %504 = vmatpush1.msra.mxu0 0.0
        %505 = vmatprep.subr.mxu0 0.0
        %506 = vmatpush1.msra.mxu0 0.0
        %507 = vmatprep.subr.mxu0 0.0
        %508 = vmatpush1.msra.mxu0 0.0
        %509 = vmatprep.subr.mxu0 0.0
        %510 = vmatpush1.msra.mxu0 0.0
        %511 = vmatprep.subr.mxu0 0.0
        %512 = vmatpush1.msra.mxu0 0.0
        %513 = vmatprep.subr.mxu0 0.0
        %514 = vmatpush1.msra.mxu0 0.0
        %515 = vmatprep.subr.mxu0 0.0
        %516 = vmatpush1.msra.mxu0 0.0
        %517 = vmatprep.subr.mxu0 0.0
        %518 = vmatpush1.msra.mxu0 0.0
        %519 = vmatprep.subr.mxu0 0.0
        %520 = vmatpush1.msra.mxu0 0.0
        %521 = vmatprep.subr.mxu0 0.0
        %522 = vmatpush1.msra.mxu0 0.0
        %523 = vmatprep.mubr.f32.mxu0 0.0
        %524 = vmatmul.mubr.f32.gmra.mrb[0].mxu0 %v457
        %v525 = vpop.f32.mrb[0].mxu0
        %v526 = vadd.f32 %v455, %v525
        %v527 = vpop.f32.mrb[0].mxu0
        %528 = vdwg.mxu0
        %529 = vst.msk [vmem:[#allocation2 + $0x6] sm:$0x3] %vm294, %v526
        %v530 = vld [vmem:[#allocation2] sm:$0xff]
        %v531 = vld [vmem:[%s3] sm:$0xff]
        %v532 = vld [vmem:[%s4] sm:$0xff]
        %534 = vset.pattern.permute.xlu0 0
        %535 = vperm.xlu0 %534, %v532
        %v536 = vpop.permute.xlu0 %535
        %vm538 = vcmask 64512
        %v540 = vsel %vm538, %v531, 0
        %542 = vmatprep.subr.mxu0 0.0
        %543 = vmatpush1.msra.mxu0 %v530
        %544 = vmatprep.subr.mxu0 0.0
        %545 = vmatpush1.msra.mxu0 0.0
        %546 = vmatprep.subr.mxu0 0.0
        %547 = vmatpush1.msra.mxu0 0.0
        %548 = vmatprep.subr.mxu0 0.0
        %549 = vmatpush1.msra.mxu0 0.0
        %550 = vmatprep.subr.mxu0 0.0
        %551 = vmatpush1.msra.mxu0 0.0
        %552 = vmatprep.subr.mxu0 0.0
        %553 = vmatpush1.msra.mxu0 0.0
        %554 = vmatprep.subr.mxu0 0.0
        %555 = vmatpush1.msra.mxu0 0.0
        %556 = vmatprep.subr.mxu0 0.0
        %557 = vmatpush1.msra.mxu0 0.0
        %558 = vmatprep.subr.mxu0 0.0
        %559 = vmatpush1.msra.mxu0 0.0
        %560 = vmatprep.subr.mxu0 0.0
        %561 = vmatpush1.msra.mxu0 0.0
        %562 = vmatprep.subr.mxu0 0.0
        %563 = vmatpush1.msra.mxu0 0.0
        %564 = vmatprep.subr.mxu0 0.0
        %565 = vmatpush1.msra.mxu0 0.0
        %566 = vmatprep.subr.mxu0 0.0
        %567 = vmatpush1.msra.mxu0 0.0
        %568 = vmatprep.subr.mxu0 0.0
        %569 = vmatpush1.msra.mxu0 0.0
        %570 = vmatprep.subr.mxu0 0.0
        %571 = vmatpush1.msra.mxu0 0.0
        %572 = vmatprep.subr.mxu0 0.0
        %573 = vmatpush1.msra.mxu0 0.0
        %574 = vmatprep.subr.mxu0 0.0
        %575 = vmatpush1.msra.mxu0 0.0
        %576 = vmatprep.subr.mxu0 0.0
        %577 = vmatpush1.msra.mxu0 0.0
        %578 = vmatprep.subr.mxu0 0.0
        %579 = vmatpush1.msra.mxu0 0.0
        %580 = vmatprep.subr.mxu0 0.0
        %581 = vmatpush1.msra.mxu0 0.0
        %582 = vmatprep.subr.mxu0 0.0
        %583 = vmatpush1.msra.mxu0 0.0
        %584 = vmatprep.subr.mxu0 0.0
        %585 = vmatpush1.msra.mxu0 0.0
        %586 = vmatprep.subr.mxu0 0.0
        %587 = vmatpush1.msra.mxu0 0.0
        %588 = vmatprep.subr.mxu0 0.0
        %589 = vmatpush1.msra.mxu0 0.0
        %590 = vmatprep.subr.mxu0 0.0
        %591 = vmatpush1.msra.mxu0 0.0
        %592 = vmatprep.subr.mxu0 0.0
        %593 = vmatpush1.msra.mxu0 0.0
        %594 = vmatprep.subr.mxu0 0.0
        %595 = vmatpush1.msra.mxu0 0.0
        %596 = vmatprep.subr.mxu0 0.0
        %597 = vmatpush1.msra.mxu0 0.0
        %598 = vmatprep.subr.mxu0 0.0
        %599 = vmatpush1.msra.mxu0 0.0
        %600 = vmatprep.subr.mxu0 0.0
        %601 = vmatpush1.msra.mxu0 0.0
        %602 = vmatprep.subr.mxu0 0.0
        %603 = vmatpush1.msra.mxu0 0.0
        %604 = vmatprep.subr.mxu0 0.0
        %605 = vmatpush1.msra.mxu0 0.0
        %606 = vmatprep.mubr.f32.mxu0 0.0
        %607 = vmatmul.mubr.f32.gmra.mrb[0].mxu0 %v540
        %v608 = vpop.f32.mrb[0].mxu0
        %v609 = vadd.f32 %v536, %v608
        %v610 = vpop.f32.mrb[0].mxu0
        %611 = vdwg.mxu0
        %v612 = vmul.f32 %v609, 0.5
        %v613 = vtanh.pop %v612
        %v614 = vmul.f32 %v613, 0.5
        %v615 = vadd.f32 %v614, 0.5
        %v616 = vmul.f32 %v609, %v615
        %s617 = scalar_lea.vmem %s3, 8
        %v618 = vld [vmem:[%s617] sm:$0xff]
        %s619 = scalar_lea.vmem %s4, 8
        %v620 = vld [vmem:[%s619] sm:$0xff]
        %622 = vset.pattern.permute.xlu0 0
        %623 = vperm.xlu0 %622, %v620
        %v624 = vpop.permute.xlu0 %623
        %v627 = vsel %vm538, %v618, 0
        %629 = vmatprep.subr.mxu0 0.0
        %630 = vmatpush1.msra.mxu0 %v616
        %631 = vmatprep.subr.mxu0 0.0
        %632 = vmatpush1.msra.mxu0 0.0
        %633 = vmatprep.subr.mxu0 0.0
        %634 = vmatpush1.msra.mxu0 0.0
        %635 = vmatprep.subr.mxu0 0.0
        %636 = vmatpush1.msra.mxu0 0.0
        %637 = vmatprep.subr.mxu0 0.0
        %638 = vmatpush1.msra.mxu0 0.0
        %639 = vmatprep.subr.mxu0 0.0
        %640 = vmatpush1.msra.mxu0 0.0
        %641 = vmatprep.subr.mxu0 0.0
        %642 = vmatpush1.msra.mxu0 0.0
        %643 = vmatprep.subr.mxu0 0.0
        %644 = vmatpush1.msra.mxu0 0.0
        %645 = vmatprep.subr.mxu0 0.0
        %646 = vmatpush1.msra.mxu0 0.0
        %647 = vmatprep.subr.mxu0 0.0
        %648 = vmatpush1.msra.mxu0 0.0
        %649 = vmatprep.subr.mxu0 0.0
        %650 = vmatpush1.msra.mxu0 0.0
        %651 = vmatprep.subr.mxu0 0.0
        %652 = vmatpush1.msra.mxu0 0.0
        %653 = vmatprep.subr.mxu0 0.0
        %654 = vmatpush1.msra.mxu0 0.0
        %655 = vmatprep.subr.mxu0 0.0
        %656 = vmatpush1.msra.mxu0 0.0
        %657 = vmatprep.subr.mxu0 0.0
        %658 = vmatpush1.msra.mxu0 0.0
        %659 = vmatprep.subr.mxu0 0.0
        %660 = vmatpush1.msra.mxu0 0.0
        %661 = vmatprep.subr.mxu0 0.0
        %662 = vmatpush1.msra.mxu0 0.0
        %663 = vmatprep.subr.mxu0 0.0
        %664 = vmatpush1.msra.mxu0 0.0
        %665 = vmatprep.subr.mxu0 0.0
        %666 = vmatpush1.msra.mxu0 0.0
        %667 = vmatprep.subr.mxu0 0.0
        %668 = vmatpush1.msra.mxu0 0.0
        %669 = vmatprep.subr.mxu0 0.0
        %670 = vmatpush1.msra.mxu0 0.0
        %671 = vmatprep.subr.mxu0 0.0
        %672 = vmatpush1.msra.mxu0 0.0
        %673 = vmatprep.subr.mxu0 0.0
        %674 = vmatpush1.msra.mxu0 0.0
        %675 = vmatprep.subr.mxu0 0.0
        %676 = vmatpush1.msra.mxu0 0.0
        %677 = vmatprep.subr.mxu0 0.0
        %678 = vmatpush1.msra.mxu0 0.0
        %679 = vmatprep.subr.mxu0 0.0
        %680 = vmatpush1.msra.mxu0 0.0
        %681 = vmatprep.subr.mxu0 0.0
        %682 = vmatpush1.msra.mxu0 0.0
        %683 = vmatprep.subr.mxu0 0.0
        %684 = vmatpush1.msra.mxu0 0.0
        %685 = vmatprep.subr.mxu0 0.0
        %686 = vmatpush1.msra.mxu0 0.0
        %687 = vmatprep.subr.mxu0 0.0
        %688 = vmatpush1.msra.mxu0 0.0
        %689 = vmatprep.subr.mxu0 0.0
        %690 = vmatpush1.msra.mxu0 0.0
        %691 = vmatprep.subr.mxu0 0.0
        %692 = vmatpush1.msra.mxu0 0.0
        %693 = vmatprep.mubr.f32.mxu0 0.0
        %694 = vmatmul.mubr.f32.gmra.mrb[0].mxu0 %v627
        %v695 = vpop.f32.mrb[0].mxu0
        %v696 = vadd.f32 %v624, %v695
        %v697 = vpop.f32.mrb[0].mxu0
        %698 = vdwg.mxu0
        %v699 = vmul.f32 %v696, 0.5
        %v700 = vtanh.pop %v699
        %v701 = vmul.f32 %v700, 0.5
        %v702 = vadd.f32 %v701, 0.5
        %v703 = vmul.f32 %v696, %v702
        %s704 = scalar_lea.vmem %s3, 16
        %v705 = vld [vmem:[%s704] sm:$0xff]
        %s706 = scalar_lea.vmem %s4, 16
        %v707 = vld [vmem:[%s706] sm:$0xff]
        %709 = vset.pattern.permute.xlu0 0
        %710 = vperm.xlu0 %709, %v707
        %v711 = vpop.permute.xlu0 %710
        %v714 = vsel %vm538, %v705, 0
        %716 = vmatprep.subr.mxu0 0.0
        %717 = vmatpush1.msra.mxu0 %v703
        %718 = vmatprep.subr.mxu0 0.0
        %719 = vmatpush1.msra.mxu0 0.0
        %720 = vmatprep.subr.mxu0 0.0
        %721 = vmatpush1.msra.mxu0 0.0
        %722 = vmatprep.subr.mxu0 0.0
        %723 = vmatpush1.msra.mxu0 0.0
        %724 = vmatprep.subr.mxu0 0.0
        %725 = vmatpush1.msra.mxu0 0.0
        %726 = vmatprep.subr.mxu0 0.0
        %727 = vmatpush1.msra.mxu0 0.0
        %728 = vmatprep.subr.mxu0 0.0
        %729 = vmatpush1.msra.mxu0 0.0
        %730 = vmatprep.subr.mxu0 0.0
        %731 = vmatpush1.msra.mxu0 0.0
        %732 = vmatprep.subr.mxu0 0.0
        %733 = vmatpush1.msra.mxu0 0.0
        %734 = vmatprep.subr.mxu0 0.0
        %735 = vmatpush1.msra.mxu0 0.0
        %736 = vmatprep.subr.mxu0 0.0
        %737 = vmatpush1.msra.mxu0 0.0
        %738 = vmatprep.subr.mxu0 0.0
        %739 = vmatpush1.msra.mxu0 0.0
        %740 = vmatprep.subr.mxu0 0.0
        %741 = vmatpush1.msra.mxu0 0.0
        %742 = vmatprep.subr.mxu0 0.0
        %743 = vmatpush1.msra.mxu0 0.0
        %744 = vmatprep.subr.mxu0 0.0
        %745 = vmatpush1.msra.mxu0 0.0
        %746 = vmatprep.subr.mxu0 0.0
        %747 = vmatpush1.msra.mxu0 0.0
        %748 = vmatprep.subr.mxu0 0.0
        %749 = vmatpush1.msra.mxu0 0.0
        %750 = vmatprep.subr.mxu0 0.0
        %751 = vmatpush1.msra.mxu0 0.0
        %752 = vmatprep.subr.mxu0 0.0
        %753 = vmatpush1.msra.mxu0 0.0
        %754 = vmatprep.subr.mxu0 0.0
        %755 = vmatpush1.msra.mxu0 0.0
        %756 = vmatprep.subr.mxu0 0.0
        %757 = vmatpush1.msra.mxu0 0.0
        %758 = vmatprep.subr.mxu0 0.0
        %759 = vmatpush1.msra.mxu0 0.0
        %760 = vmatprep.subr.mxu0 0.0
        %761 = vmatpush1.msra.mxu0 0.0
        %762 = vmatprep.subr.mxu0 0.0
        %763 = vmatpush1.msra.mxu0 0.0
        %764 = vmatprep.subr.mxu0 0.0
        %765 = vmatpush1.msra.mxu0 0.0
        %766 = vmatprep.subr.mxu0 0.0
        %767 = vmatpush1.msra.mxu0 0.0
        %768 = vmatprep.subr.mxu0 0.0
        %769 = vmatpush1.msra.mxu0 0.0
        %770 = vmatprep.subr.mxu0 0.0
        %771 = vmatpush1.msra.mxu0 0.0
        %772 = vmatprep.subr.mxu0 0.0
        %773 = vmatpush1.msra.mxu0 0.0
        %774 = vmatprep.subr.mxu0 0.0
        %775 = vmatpush1.msra.mxu0 0.0
        %776 = vmatprep.subr.mxu0 0.0
        %777 = vmatpush1.msra.mxu0 0.0
        %778 = vmatprep.subr.mxu0 0.0
        %779 = vmatpush1.msra.mxu0 0.0
        %780 = vmatprep.mubr.f32.mxu0 0.0
        %781 = vmatmul.mubr.f32.gmra.mrb[0].mxu0 %v714
        %v782 = vpop.f32.mrb[0].mxu0
        %v783 = vadd.f32 %v711, %v782
        %v784 = vpop.f32.mrb[0].mxu0
        %785 = vdwg.mxu0
        %v786 = vmul.f32 %v783, 0.5
        %v787 = vtanh.pop %v786
        %v788 = vmul.f32 %v787, 0.5
        %v789 = vadd.f32 %v788, 0.5
        %v790 = vmul.f32 %v783, %v789
        %s791 = scalar_lea.vmem %s3, 24
        %v792 = vld [vmem:[%s791] sm:$0xff]
        %s793 = scalar_lea.vmem %s4, 24
        %v794 = vld [vmem:[%s793] sm:$0xff]
        %796 = vset.pattern.permute.xlu0 0
        %797 = vperm.xlu0 %796, %v794
        %v798 = vpop.permute.xlu0 %797
        %v801 = vsel %vm538, %v792, 0
        %803 = vmatprep.subr.mxu0 0.0
        %804 = vmatpush1.msra.mxu0 %v790
        %805 = vmatprep.subr.mxu0 0.0
        %806 = vmatpush1.msra.mxu0 0.0
        %807 = vmatprep.subr.mxu0 0.0
        %808 = vmatpush1.msra.mxu0 0.0
        %809 = vmatprep.subr.mxu0 0.0
        %810 = vmatpush1.msra.mxu0 0.0
        %811 = vmatprep.subr.mxu0 0.0
        %812 = vmatpush1.msra.mxu0 0.0
        %813 = vmatprep.subr.mxu0 0.0
        %814 = vmatpush1.msra.mxu0 0.0
        %815 = vmatprep.subr.mxu0 0.0
        %816 = vmatpush1.msra.mxu0 0.0
        %817 = vmatprep.subr.mxu0 0.0
        %818 = vmatpush1.msra.mxu0 0.0
        %819 = vmatprep.subr.mxu0 0.0
        %820 = vmatpush1.msra.mxu0 0.0
        %821 = vmatprep.subr.mxu0 0.0
        %822 = vmatpush1.msra.mxu0 0.0
        %823 = vmatprep.subr.mxu0 0.0
        %824 = vmatpush1.msra.mxu0 0.0
        %825 = vmatprep.subr.mxu0 0.0
        %826 = vmatpush1.msra.mxu0 0.0
        %827 = vmatprep.subr.mxu0 0.0
        %828 = vmatpush1.msra.mxu0 0.0
        %829 = vmatprep.subr.mxu0 0.0
        %830 = vmatpush1.msra.mxu0 0.0
        %831 = vmatprep.subr.mxu0 0.0
        %832 = vmatpush1.msra.mxu0 0.0
        %833 = vmatprep.subr.mxu0 0.0
        %834 = vmatpush1.msra.mxu0 0.0
        %835 = vmatprep.subr.mxu0 0.0
        %836 = vmatpush1.msra.mxu0 0.0
        %837 = vmatprep.subr.mxu0 0.0
        %838 = vmatpush1.msra.mxu0 0.0
        %839 = vmatprep.subr.mxu0 0.0
        %840 = vmatpush1.msra.mxu0 0.0
        %841 = vmatprep.subr.mxu0 0.0
        %842 = vmatpush1.msra.mxu0 0.0
        %843 = vmatprep.subr.mxu0 0.0
        %844 = vmatpush1.msra.mxu0 0.0
        %845 = vmatprep.subr.mxu0 0.0
        %846 = vmatpush1.msra.mxu0 0.0
        %847 = vmatprep.subr.mxu0 0.0
        %848 = vmatpush1.msra.mxu0 0.0
        %849 = vmatprep.subr.mxu0 0.0
        %850 = vmatpush1.msra.mxu0 0.0
        %851 = vmatprep.subr.mxu0 0.0
        %852 = vmatpush1.msra.mxu0 0.0
        %853 = vmatprep.subr.mxu0 0.0
        %854 = vmatpush1.msra.mxu0 0.0
        %855 = vmatprep.subr.mxu0 0.0
        %856 = vmatpush1.msra.mxu0 0.0
        %857 = vmatprep.subr.mxu0 0.0
        %858 = vmatpush1.msra.mxu0 0.0
        %859 = vmatprep.subr.mxu0 0.0
        %860 = vmatpush1.msra.mxu0 0.0
        %861 = vmatprep.subr.mxu0 0.0
        %862 = vmatpush1.msra.mxu0 0.0
        %863 = vmatprep.subr.mxu0 0.0
        %864 = vmatpush1.msra.mxu0 0.0
        %865 = vmatprep.subr.mxu0 0.0
        %866 = vmatpush1.msra.mxu0 0.0
        %867 = vmatprep.mubr.f32.mxu0 0.0
        %868 = vmatmul.mubr.f32.gmra.mrb[0].mxu0 %v801
        %v869 = vpop.f32.mrb[0].mxu0
        %v870 = vadd.f32 %v798, %v869
        %v871 = vpop.f32.mrb[0].mxu0
        %872 = vdwg.mxu0
        %v873 = vmul.f32 %v870, 0.5
        %v874 = vtanh.pop %v873
        %v875 = vmul.f32 %v874, 0.5
        %v876 = vadd.f32 %v875, 0.5
        %v877 = vmul.f32 %v870, %v876
        %s878 = scalar_lea.vmem %s3, 32
        %v879 = vld [vmem:[%s878] sm:$0xff]
        %s880 = scalar_lea.vmem %s4, 32
        %v881 = vld [vmem:[%s880] sm:$0xff]
        %883 = vset.pattern.permute.xlu0 0
        %884 = vperm.xlu0 %883, %v881
        %v885 = vpop.permute.xlu0 %884
        %v888 = vsel %vm538, %v879, 0
        %890 = vmatprep.subr.mxu0 0.0
        %891 = vmatpush1.msra.mxu0 %v877
        %892 = vmatprep.subr.mxu0 0.0
        %893 = vmatpush1.msra.mxu0 0.0
        %894 = vmatprep.subr.mxu0 0.0
        %895 = vmatpush1.msra.mxu0 0.0
        %896 = vmatprep.subr.mxu0 0.0
        %897 = vmatpush1.msra.mxu0 0.0
        %898 = vmatprep.subr.mxu0 0.0
        %899 = vmatpush1.msra.mxu0 0.0
        %900 = vmatprep.subr.mxu0 0.0
        %901 = vmatpush1.msra.mxu0 0.0
        %902 = vmatprep.subr.mxu0 0.0
        %903 = vmatpush1.msra.mxu0 0.0
        %904 = vmatprep.subr.mxu0 0.0
        %905 = vmatpush1.msra.mxu0 0.0
        %906 = vmatprep.subr.mxu0 0.0
        %907 = vmatpush1.msra.mxu0 0.0
        %908 = vmatprep.subr.mxu0 0.0
        %909 = vmatpush1.msra.mxu0 0.0
        %910 = vmatprep.subr.mxu0 0.0
        %911 = vmatpush1.msra.mxu0 0.0
        %912 = vmatprep.subr.mxu0 0.0
        %913 = vmatpush1.msra.mxu0 0.0
        %914 = vmatprep.subr.mxu0 0.0
        %915 = vmatpush1.msra.mxu0 0.0
        %916 = vmatprep.subr.mxu0 0.0
        %917 = vmatpush1.msra.mxu0 0.0
        %918 = vmatprep.subr.mxu0 0.0
        %919 = vmatpush1.msra.mxu0 0.0
        %920 = vmatprep.subr.mxu0 0.0
        %921 = vmatpush1.msra.mxu0 0.0
        %922 = vmatprep.subr.mxu0 0.0
        %923 = vmatpush1.msra.mxu0 0.0
        %924 = vmatprep.subr.mxu0 0.0
        %925 = vmatpush1.msra.mxu0 0.0
        %926 = vmatprep.subr.mxu0 0.0
        %927 = vmatpush1.msra.mxu0 0.0
        %928 = vmatprep.subr.mxu0 0.0
        %929 = vmatpush1.msra.mxu0 0.0
        %930 = vmatprep.subr.mxu0 0.0
        %931 = vmatpush1.msra.mxu0 0.0
        %932 = vmatprep.subr.mxu0 0.0
        %933 = vmatpush1.msra.mxu0 0.0
        %934 = vmatprep.subr.mxu0 0.0
        %935 = vmatpush1.msra.mxu0 0.0
        %936 = vmatprep.subr.mxu0 0.0
        %937 = vmatpush1.msra.mxu0 0.0
        %938 = vmatprep.subr.mxu0 0.0
        %939 = vmatpush1.msra.mxu0 0.0
        %940 = vmatprep.subr.mxu0 0.0
        %941 = vmatpush1.msra.mxu0 0.0
        %942 = vmatprep.subr.mxu0 0.0
        %943 = vmatpush1.msra.mxu0 0.0
        %944 = vmatprep.subr.mxu0 0.0
        %945 = vmatpush1.msra.mxu0 0.0
        %946 = vmatprep.subr.mxu0 0.0
        %947 = vmatpush1.msra.mxu0 0.0
        %948 = vmatprep.subr.mxu0 0.0
        %949 = vmatpush1.msra.mxu0 0.0
        %950 = vmatprep.subr.mxu0 0.0
        %951 = vmatpush1.msra.mxu0 0.0
        %952 = vmatprep.subr.mxu0 0.0
        %953 = vmatpush1.msra.mxu0 0.0
        %954 = vmatprep.mubr.f32.mxu0 0.0
        %955 = vmatmul.mubr.f32.gmra.mrb[0].mxu0 %v888
        %v956 = vpop.f32.mrb[0].mxu0
        %v957 = vadd.f32 %v885, %v956
        %v958 = vpop.f32.mrb[0].mxu0
        %959 = vdwg.mxu0
        %v960 = vmul.f32 %v957, 0.5
        %v961 = vtanh.pop %v960
        %v962 = vmul.f32 %v961, 0.5
        %v963 = vadd.f32 %v962, 0.5
        %v964 = vmul.f32 %v957, %v963
        %965 = vst.msk [vmem:[%s211] sm:$0x3] %vm294, %v964
        %s966 = scalar_lea.vmem %s211, 2 [#allocation3]
        %vm967 = vcmask 60418
        %968 = vst.msk [vmem:[%s966 - $0x2] sm:$0xc] %vm967, %v964
        %s969 = scalar_lea.vmem %s211, 4 [#allocation3]
        %vm970 = vcmask 62468
        %971 = vst.msk [vmem:[%s969 - $0x4] sm:$0x30] %vm970, %v964
        %s972 = scalar_lea.vmem %s211, 6 [#allocation3]
        %vm973 = vcmask 64518
        %974 = vst.msk [vmem:[%s972 - $0x6] sm:$0xc0] %vm973, %v964
        %s975 = sand.u32 %s134, 1
        %s976 = sand.u32 %s134, 1
        %s977 = smul.addr %s976, 8
        %s978 = scalar_lea.vmem [#allocation3], %s977
        // Predicated region
        $region41: #{multi_channel_mlp_prepared.2} parent=39 // pred_check
          %p979 = pneg %p144
        $region42: #{multi_channel_mlp_prepared.2} parent=39 // pred_check_branch
          %981 = sbr.rel (%p979) target = $region44
        $region43: #{multi_channel_mlp_prepared.2} parent=39 // pred_region
          %s982 = smul.addr %s16, 2
          %s983 = scalar_lea.vmem %s5, %s982
          // Predicated region
          $region45: #{multi_channel_mlp_prepared.2} parent=43 // pred_check
            _
          $region46: #{multi_channel_mlp_prepared.2} parent=43 // pred_check_branch
            %985 = sbr.rel (0) target = $region48
          $region47: #{multi_channel_mlp_prepared.2} parent=43 // pred_region
            // Predicated region
            $region49: #{multi_channel_mlp_prepared.2} parent=47 // pred_check
              _
            $region50: #{multi_channel_mlp_prepared.2} parent=47 // pred_check_branch
              %987 = sbr.rel target = $region52
            $region51: #{multi_channel_mlp_prepared.2} parent=47 // pred_region
              // Predicated region
              $region64: #{multi_channel_mlp_prepared.2} parent=51 // pred_check
                _
              $region65: #{multi_channel_mlp_prepared.2} parent=51 // pred_check_branch
                %1008 = sbr.rel (0) target = $region67
              $region66: #{multi_channel_mlp_prepared.2} parent=51 // pred_region
                loop: start=0, step=1, limit=1
                $region68: #{multi_channel_mlp_prepared.2} parent=66 // loop_pre_header
                  _
                $region69: #{multi_channel_mlp_prepared.2} parent=66 // loop_header
                  %s1010 = sphi 0, %s1014
                  %p1011 = scmp.ge.s32.totalorder %s1010, 1
                  %s1015 = sphi %s978, %s978
                  %s1016 = sphi %s983, %s983
                $region70: #{multi_channel_mlp_prepared.2} parent=66 // loop_header_branch
                  %1013 = sbr.rel (%p1011) target = $region74
                $region71: #{multi_channel_mlp_prepared.2} parent=66 // loop_body
                  _
                $region72: #{multi_channel_mlp_prepared.2} parent=66 // loop_footer
                  %s1014 = sadd.s32 1, %s1010
                $region73: #{multi_channel_mlp_prepared.2} parent=66 // loop_footer_branch
                  %1009 = sbr.rel target = $region69
                $region74: #{multi_channel_mlp_prepared.2} parent=66 // loop_exit
                  _
                loop: start=0, step=1, limit=1
                $region75: #{multi_channel_mlp_prepared.2} parent=66 // loop_pre_header
                  _
                $region76: #{multi_channel_mlp_prepared.2} parent=66 // loop_header
                  %s1019 = sphi 0, %s1023
                  %p1020 = scmp.ge.s32.totalorder %s1019, 1
                  %s1024 = sphi %s978, %s978
                  %s1025 = sphi %s983, %s983
                $region77: #{multi_channel_mlp_prepared.2} parent=66 // loop_header_branch
                  %1022 = sbr.rel (%p1020) target = $region81
                $region78: #{multi_channel_mlp_prepared.2} parent=66 // loop_body
                  %v1026 = vld [vmem:[%s1024] sm:$0x3]
                  %1027 = vst [vmem:[%s1025] sm:$0x3] %v1026
                  %v1028 = vld [vmem:[%s1024 + $0x2] sm:$0x3]
                  %1029 = vst [vmem:[%s1025 + $0x4] sm:$0x3] %v1028
                  %v1030 = vld [vmem:[%s1024 + $0x4] sm:$0x3]
                  %1031 = vst [vmem:[%s1025 + $0x8] sm:$0x3] %v1030
                  %v1032 = vld [vmem:[%s1024 + $0x6] sm:$0x3]
                  %1033 = vst [vmem:[%s1025 + $0xc] sm:$0x3] %v1032
                $region79: #{multi_channel_mlp_prepared.2} parent=66 // loop_footer
                  %s1023 = sadd.s32 1, %s1019
                $region80: #{multi_channel_mlp_prepared.2} parent=66 // loop_footer_branch
                  %1018 = sbr.rel target = $region76
                $region81: #{multi_channel_mlp_prepared.2} parent=66 // loop_exit
                  _
              $region67: #{multi_channel_mlp_prepared.2} parent=51 // pred_fallthru
                _
            $region52: #{multi_channel_mlp_prepared.2} parent=47 // pred_fallthru
              _
            // Predicated region
            $region53: #{multi_channel_mlp_prepared.2} parent=47 // pred_check
              _
            $region54: #{multi_channel_mlp_prepared.2} parent=47 // pred_check_branch
              %989 = sbr.rel (0) target = $region56
            $region55: #{multi_channel_mlp_prepared.2} parent=47 // pred_region
              loop: start=0, step=1, limit=1
              $region57: #{multi_channel_mlp_prepared.2} parent=55 // loop_pre_header
                _
              $region58: #{multi_channel_mlp_prepared.2} parent=55 // loop_header
                %s992 = sphi 0, %s996
                %p993 = scmp.ge.s32.totalorder %s992, 1
                %s997 = sphi %s978, %s978
                %s998 = sphi %s983, %s983
              $region59: #{multi_channel_mlp_prepared.2} parent=55 // loop_header_branch
                %995 = sbr.rel (%p993) target = $region63
              $region60: #{multi_channel_mlp_prepared.2} parent=55 // loop_body
                %v999 = vld [vmem:[%s997] sm:$0x3]
                %1000 = vst [vmem:[%s998] sm:$0x3] %v999
                %v1001 = vld [vmem:[%s997 + $0x2] sm:$0x3]
                %1002 = vst [vmem:[%s998 + $0x4] sm:$0x3] %v1001
                %v1003 = vld [vmem:[%s997 + $0x4] sm:$0x3]
                %1004 = vst [vmem:[%s998 + $0x8] sm:$0x3] %v1003
                %v1005 = vld [vmem:[%s997 + $0x6] sm:$0x3]
                %1006 = vst [vmem:[%s998 + $0xc] sm:$0x3] %v1005
              $region61: #{multi_channel_mlp_prepared.2} parent=55 // loop_footer
                %s996 = sadd.s32 1, %s992
              $region62: #{multi_channel_mlp_prepared.2} parent=55 // loop_footer_branch
                %991 = sbr.rel target = $region58
              $region63: #{multi_channel_mlp_prepared.2} parent=55 // loop_exit
                _
            $region56: #{multi_channel_mlp_prepared.2} parent=47 // pred_fallthru
              _
          $region48: #{multi_channel_mlp_prepared.2} parent=43 // pred_fallthru
            _
          %1034 = vnop
        $region44: #{multi_channel_mlp_prepared.2} parent=39 // pred_fallthru
          _
      $region40: #{multi_channel_mlp_prepared.2} parent=5 // pred_fallthru
        _
      %p1035 = scmp.le.s32.totalorder 2, %s11
      // Predicated region
      $region82: #{multi_channel_mlp_prepared.2} parent=5 // pred_check
        %p1036 = pneg %p1035
      $region83: #{multi_channel_mlp_prepared.2} parent=5 // pred_check_branch
        %1038 = sbr.rel (%p1036) target = $region85
      $region84: #{multi_channel_mlp_prepared.2} parent=5 // pred_region
        %s1039 = ssub.s32 %s11, 2
        // Predicated region
        $region86: #{multi_channel_mlp_prepared.2} parent=84 // pred_check
          %p1040 = pneg %p150
        $region87: #{multi_channel_mlp_prepared.2} parent=84 // pred_check_branch
          %1042 = sbr.rel (%p1040) target = $region89
        $region88: #{multi_channel_mlp_prepared.2} parent=84 // pred_region
          %s1043 = sand.u32 %s135, 1
          %s1044 = sand.u32 %s135, 1
          %s1045 = smul.addr %s1044, 8
          %s1046 = scalar_lea.vmem [#allocation3], %s1045
        $region89: #{multi_channel_mlp_prepared.2} parent=84 // pred_fallthru
          _
      $region85: #{multi_channel_mlp_prepared.2} parent=5 // pred_fallthru
        _
    $region6: #{multi_channel_mlp_prepared.2} parent=1 // loop_footer
      %s15 = sadd.s32 1, %s11
    $region7: #{multi_channel_mlp_prepared.2} parent=1 // loop_footer_branch
      %10 = sbr.rel target = $region3
    $region8: #{multi_channel_mlp_prepared.2} parent=1 // loop_exit
      _

</llo_original>
